<compile_context>
chip_gen: v7x
topology: tpu7x:2x2x1
jax: 0.10.0
libtpu: 0.0.40
codegen_flags: <defaults>
</compile_context>

<pallas_src>
import math

import jax
import jax.numpy as jnp
from jax.experimental import pallas as pl
from jax.experimental.pallas import tpu as pltpu


def _round_up(x, m):
    return (x + m - 1) // m * m


def decoder_seq_kernel(x_ref,          # (Tp, H)  bf16  relu(embedding[tokens]) rows
                       w_ih_ref,       # (H, 3H)  bf16  fused [r|z|n] input-side weights
                       w_hh_ref,       # (H, 3H)  bf16  fused [r|z|n] hidden-side weights
                       b_ih_ref,       # (1, 3H)  f32
                       b_hh_ref,       # (1, 3H)  f32
                       w_out_ref,      # (H, Vp)  bf16
                       b_out_ref,      # (1, Vp)  f32   (-1e30 on padded columns)
                       h0_ref,         # (1, H)   f32
                       logp_ref,       # out (Tp, Vp) f32
                       hout_ref,       # out (Tp, H)  f32
                       gi_sc,          # scratch (Tp, 3H) f32
                       h_all_sc):      # scratch (Tp, H)  f32
    Tp, H = hout_ref.shape

    # ---- Phase 1: batched input-side gate pre-activations (one MXU matmul). ----
    gi_sc[...] = jnp.dot(x_ref[...], w_ih_ref[...],
                         preferred_element_type=jnp.float32) + b_ih_ref[...]

    # ---- Phase 2: sequential GRU recurrence.  Only the (1,H)x(H,3H) hidden-side
    #      dot and the gate VPU/EUP work remain on the per-step critical path. ----
    def step(t, h):
        gi = gi_sc[pl.ds(t, 1), :]                                        # (1, 3H) f32
        gh = jnp.dot(h.astype(jnp.bfloat16), w_hh_ref[...],
                     preferred_element_type=jnp.float32) + b_hh_ref[...]  # (1, 3H) f32
        r = jax.nn.sigmoid(gi[:, 0:H] + gh[:, 0:H])
        z = jax.nn.sigmoid(gi[:, H:2 * H] + gh[:, H:2 * H])
        n = jnp.tanh(gi[:, 2 * H:3 * H] + r * gh[:, 2 * H:3 * H])         # PyTorch GRU: r gates hidden term
        h_new = (1.0 - z) * n + z * h                                     # (1, H) f32
        h_all_sc[pl.ds(t, 1), :] = h_new
        return h_new

    _ = jax.lax.fori_loop(0, Tp, step, h0_ref[...],
                          unroll=True if Tp <= 16 else 4)

    # ---- One dense writeback of all hidden states (no per-step masked stores). ----
    hout_ref[...] = h_all_sc[...]

    # ---- Phase 3: batched output Linear + log-softmax (one MXU matmul,
    #      lane+sublane dense (Tp, Vp) store). ----
    logits = jnp.dot(h_all_sc[...].astype(jnp.bfloat16), w_out_ref[...],
                     preferred_element_type=jnp.float32) + b_out_ref[...]
    m = jnp.max(logits, axis=-1, keepdims=True)
    shifted = logits - m
    lse = jnp.log(jnp.sum(jnp.exp(shifted), axis=-1, keepdims=True))
    logp_ref[...] = shifted - lse


class DecoderRNNPallas:
    def __init__(self, hidden_size, output_size, key):
        self.hidden_size = H = int(hidden_size)
        self.output_size = V = int(output_size)
        self.vocab_padded = Vp = _round_up(V, 128)

        ks = jax.random.split(key, 8)
        bound = 1.0 / math.sqrt(H)
        u = lambda k, shape: jax.random.uniform(k, shape, jnp.float32, -bound, bound)

        # nn.Embedding(output_size, hidden_size): N(0, 1).  ReLU commutes with the
        # row gather and the bf16 cast, so the table is also kept pre-ReLU'd bf16.
        self.embedding = jax.random.normal(ks[0], (V, H), jnp.float32)
        self.emb_relu = jax.nn.relu(self.embedding).astype(jnp.bfloat16)

        # nn.GRU(H, H): gates stacked [r | z | n], stored transposed & fused (H, 3H) bf16.
        w_ih = jnp.concatenate([u(ks[1], (H, H)), u(ks[2], (H, H)), u(ks[3], (H, H))], axis=1)
        w_hh = jnp.concatenate([u(ks[4], (H, H)), u(ks[5], (H, H)), u(ks[6], (H, H))], axis=1)
        self.w_ih = w_ih.astype(jnp.bfloat16)
        self.w_hh = w_hh.astype(jnp.bfloat16)
        kb_ih, kb_hh, kw_out, kb_out = jax.random.split(ks[7], 4)
        self.b_ih = u(kb_ih, (1, 3 * H))
        self.b_hh = u(kb_hh, (1, 3 * H))

        # nn.Linear(H, V), padded to Vp lanes.  Padded columns: W = 0, bias = -1e30
        # kept in f32 (a bf16 cast would turn it into -inf and risk NaNs).
        w_out = jnp.zeros((H, Vp), jnp.float32).at[:, :V].set(u(kw_out, (H, V)))
        b_out = jnp.full((1, Vp), -1e30, jnp.float32).at[:, :V].set(u(kb_out, (1, V)))
        self.w_out = w_out.astype(jnp.bfloat16)
        self.b_out = b_out

    def init_hidden(self):
        return jnp.zeros((1, 1, self.hidden_size), jnp.float32)

    def decode(self, tokens, hidden):
        """Teacher-forced forward for every token in `tokens`, carrying the hidden
        state, inside ONE pallas_call.  Returns (log_probs (T, V), hiddens (T, H))."""
        H, V, Vp = self.hidden_size, self.output_size, self.vocab_padded
        tokens = jnp.asarray(tokens).reshape(-1).astype(jnp.int32)
        T = int(tokens.shape[0])
        Tp = _round_up(max(T, 1), 8)          # sublane-aligned batched phases

        # Clamp (bounds-safe) + pad token ids; gather the pre-ReLU'd bf16 embedding
        # rows with a plain-JAX take -- no data-dependent DMA inside the kernel.
        tok_p = jnp.zeros((Tp,), jnp.int32).at[:T].set(jnp.clip(tokens, 0, V - 1))
        x_all = jnp.take(self.emb_relu, tok_p, axis=0)                # (Tp, H) bf16

        h0 = jnp.asarray(hidden, jnp.float32).reshape(1, H)

        # Resident VMEM footprint (inputs + outputs + scratch), with headroom;
        # cap at 48 MiB so the request is safe on v7x (64 MiB VMEM per TC).
        resident = (Tp * H * 2                      # x_all
                    + 2 * H * 3 * H * 2             # w_ih, w_hh (bf16)
                    + 2 * 3 * H * 4                 # b_ih, b_hh
                    + H * Vp * 2 + Vp * 4           # w_out, b_out
                    + H * 4                         # h0
                    + Tp * Vp * 4 + Tp * H * 4      # outputs
                    + Tp * 3 * H * 4 + Tp * H * 4)  # scratch
        vmem_limit = int(min(48 << 20, max(4 << 20, 4 * resident)))

        vmem = pl.BlockSpec(memory_space=pltpu.MemorySpace.VMEM)
        logp_pad, h_all = pl.pallas_call(
            decoder_seq_kernel,
            out_shape=(jax.ShapeDtypeStruct((Tp, Vp), jnp.float32),
                       jax.ShapeDtypeStruct((Tp, H), jnp.float32)),
            in_specs=[vmem] * 8,
            out_specs=(vmem, vmem),
            scratch_shapes=[pltpu.VMEM((Tp, 3 * H), jnp.float32),
                            pltpu.VMEM((Tp, H), jnp.float32)],
            compiler_params=pltpu.CompilerParams(vmem_limit_bytes=vmem_limit),
        )(x_all, self.w_ih, self.w_hh, self.b_ih, self.b_hh,
          self.w_out, self.b_out, h0)

        return logp_pad[:T, :V], h_all[:T]

    def __call__(self, input_token, hidden):
        # Single-step forward, matching DecoderRNN.forward(input, hidden).
        H = self.hidden_size
        logp, h_all = self.decode(jnp.asarray(input_token).reshape(-1)[:1], hidden)
        return logp, h_all[-1].reshape(1, 1, H)


def _reference_decode(dec, tokens, hidden):
    """Plain-JAX reference of the same multi-step forward (same bf16 operand casts)."""
    H, V = dec.hidden_size, dec.output_size
    tokens = jnp.asarray(tokens).reshape(-1).astype(jnp.int32)
    h = jnp.asarray(hidden, jnp.float32).reshape(1, H)
    logps, hs = [], []
    for t in range(int(tokens.shape[0])):
        x = jax.nn.relu(dec.embedding[tokens[t]]).astype(jnp.bfloat16).reshape(1, H)
        gi = jnp.dot(x, dec.w_ih, preferred_element_type=jnp.float32) + dec.b_ih
        gh = jnp.dot(h.astype(jnp.bfloat16), dec.w_hh,
                     preferred_element_type=jnp.float32) + dec.b_hh
        gi_r, gi_z, gi_n = gi[:, :H], gi[:, H:2 * H], gi[:, 2 * H:]
        gh_r, gh_z, gh_n = gh[:, :H], gh[:, H:2 * H], gh[:, 2 * H:]
        r = jax.nn.sigmoid(gi_r + gh_r)
        z = jax.nn.sigmoid(gi_z + gh_z)
        n = jnp.tanh(gi_n + r * gh_n)
        h = (1.0 - z) * n + z * h
        logits = jnp.dot(h.astype(jnp.bfloat16), dec.w_out,
                         preferred_element_type=jnp.float32) + dec.b_out
        logps.append(jax.nn.log_softmax(logits[:, :V], axis=-1))
        hs.append(h)
    return jnp.concatenate(logps, axis=0), jnp.concatenate(hs, axis=0)


if __name__ == "__main__":
    hidden_size = 128    # small, lane-aligned stand-in for the module's 256
    output_size = 250    # vocabulary size (padded to 256 lanes inside the kernel)
    num_steps = 4        # teacher-forced decode steps in a single pallas_call (padded to 8)

    key = jax.random.PRNGKey(0)
    k_param, k_tok = jax.random.split(key)
    dec = DecoderRNNPallas(hidden_size, output_size, k_param)

    tokens = jax.random.randint(k_tok, (num_steps,), 0, output_size, dtype=jnp.int32)
    hidden = dec.init_hidden()

    # Multi-step decode: one kernel launch, batched gi / output projection,
    # sequential GRU recurrence inside the kernel.
    logp_seq, h_seq = dec.decode(tokens, hidden)
    logp_seq = jax.block_until_ready(logp_seq)
    h_seq = jax.block_until_ready(h_seq)

    logp_ref, h_ref = _reference_decode(dec, tokens, hidden)
    assert logp_seq.shape == (num_steps, output_size)
    assert h_seq.shape == (num_steps, hidden_size)
    assert bool(jnp.all(jnp.isfinite(logp_seq)))
    assert jnp.allclose(logp_seq, logp_ref, atol=1e-3, rtol=1e-3), \
        float(jnp.max(jnp.abs(logp_seq - logp_ref)))
    assert jnp.allclose(h_seq, h_ref, atol=1e-3, rtol=1e-3), \
        float(jnp.max(jnp.abs(h_seq - h_ref)))

    # Single-step module-style forward (T = 1), matching DecoderRNN.forward.
    logp1, h1 = dec(tokens[:1].reshape(1, 1), hidden)
    logp1 = jax.block_until_ready(logp1)
    h1 = jax.block_until_ready(h1)
    assert logp1.shape == (1, output_size) and h1.shape == (1, 1, hidden_size)
    assert jnp.allclose(logp1, logp_ref[:1], atol=1e-3, rtol=1e-3)
    assert jnp.allclose(h1.reshape(1, hidden_size), h_ref[:1], atol=1e-3, rtol=1e-3)

    print("KERNEL_OK")
</pallas_src>

<mosaic_0001>
module attributes {stable_mosaic.version = 11 : i64} {
  func.func @decoder_seq_kernel(%arg0: memref<8x128xbf16, #tpu.memory_space<vmem>>, %arg1: memref<128x384xbf16, #tpu.memory_space<vmem>>, %arg2: memref<128x384xbf16, #tpu.memory_space<vmem>>, %arg3: memref<1x384xf32, #tpu.memory_space<vmem>>, %arg4: memref<1x384xf32, #tpu.memory_space<vmem>>, %arg5: memref<128x256xbf16, #tpu.memory_space<vmem>>, %arg6: memref<1x256xf32, #tpu.memory_space<vmem>>, %arg7: memref<1x128xf32, #tpu.memory_space<vmem>>, %arg8: memref<8x256xf32, #tpu.memory_space<vmem>>, %arg9: memref<8x128xf32, #tpu.memory_space<vmem>>, %arg10: memref<8x384xf32, #tpu.memory_space<vmem>>, %arg11: memref<8x128xf32, #tpu.memory_space<vmem>>) attributes {dimension_semantics = [], scalar_prefetch = 0 : i64, scratch_operands = 2 : i64, tpu.core_type = #tpu.core_type<tc>} {
    %c0 = arith.constant 0 : index
    %c0_0 = arith.constant 0 : index
    %0 = vector.load %arg0[%c0, %c0_0] : memref<8x128xbf16, #tpu.memory_space<vmem>>, vector<8x128xbf16>
    %c0_1 = arith.constant 0 : index
    %c0_2 = arith.constant 0 : index
    %1 = vector.load %arg1[%c0_1, %c0_2] : memref<128x384xbf16, #tpu.memory_space<vmem>>, vector<128x384xbf16>
    %cst = arith.constant dense<0.000000e+00> : vector<8x384xf32>
    %2 = tpu.matmul %0, %1, %cst {dimension_numbers = #tpu.dot_dimension_numbers<[1], [0], [0], [1], [0, 0, 1, 1], [], []>} : vector<8x128xbf16>, vector<128x384xbf16>, vector<8x384xf32> -> vector<8x384xf32>
    %c0_3 = arith.constant 0 : index
    %c0_4 = arith.constant 0 : index
    %3 = vector.load %arg3[%c0_3, %c0_4] : memref<1x384xf32, #tpu.memory_space<vmem>>, vector<1x384xf32>
    %4 = vector.broadcast %3 : vector<1x384xf32> to vector<8x384xf32>
    %5 = arith.addf %2, %4 : vector<8x384xf32>
    %c0_5 = arith.constant 0 : index
    %c0_6 = arith.constant 0 : index
    %6 = vector.load %arg10[%c0_5, %c0_6] : memref<8x384xf32, #tpu.memory_space<vmem>>, vector<8x384xf32>
    tpu.vector_store %arg10[%c0_5, %c0_6], %5 {strides = array<i32>} : memref<8x384xf32, #tpu.memory_space<vmem>>, vector<8x384xf32>,
    %c0_7 = arith.constant 0 : index
    %c0_8 = arith.constant 0 : index
    %7 = vector.load %arg7[%c0_7, %c0_8] : memref<1x128xf32, #tpu.memory_space<vmem>>, vector<1x128xf32>
    %c0_i32 = arith.constant 0 : i32
    %8 = arith.index_cast %c0_i32 : i32 to index
    %c0_9 = arith.constant 0 : index
    %9 = vector.load %arg10[%8, %c0_9] : memref<8x384xf32, #tpu.memory_space<vmem>>, vector<1x384xf32>
    %10 = arith.truncf %7 : vector<1x128xf32> to vector<1x128xbf16>
    %c0_10 = arith.constant 0 : index
    %c0_11 = arith.constant 0 : index
    %11 = vector.load %arg2[%c0_10, %c0_11] : memref<128x384xbf16, #tpu.memory_space<vmem>>, vector<128x384xbf16>
    %cst_12 = arith.constant dense<0.000000e+00> : vector<1x384xf32>
    %12 = tpu.matmul %10, %11, %cst_12 {dimension_numbers = #tpu.dot_dimension_numbers<[1], [0], [0], [1], [0, 0, 1, 1], [], []>} : vector<1x128xbf16>, vector<128x384xbf16>, vector<1x384xf32> -> vector<1x384xf32>
    %c0_13 = arith.constant 0 : index
    %c0_14 = arith.constant 0 : index
    %13 = vector.load %arg4[%c0_13, %c0_14] : memref<1x384xf32, #tpu.memory_space<vmem>>, vector<1x384xf32>
    %14 = arith.addf %12, %13 : vector<1x384xf32>
    %15 = vector.extract_strided_slice %9 {offsets = [0, 0], sizes = [1, 128], strides = [1, 1]} : vector<1x384xf32> to vector<1x128xf32>
    %16 = vector.extract_strided_slice %14 {offsets = [0, 0], sizes = [1, 128], strides = [1, 1]} : vector<1x384xf32> to vector<1x128xf32>
    %17 = arith.addf %15, %16 : vector<1x128xf32>
    %18 = arith.negf %17 : vector<1x128xf32>
    %19 = math.exp %18 : vector<1x128xf32>
    %cst_15 = arith.constant 1.000000e+00 : f32
    %20 = vector.broadcast %cst_15 : f32 to vector<1x128xf32>
    %21 = arith.addf %20, %19 : vector<1x128xf32>
    %22 = arith.divf %20, %21 : vector<1x128xf32>
    %23 = vector.extract_strided_slice %9 {offsets = [0, 128], sizes = [1, 128], strides = [1, 1]} : vector<1x384xf32> to vector<1x128xf32>
    %24 = vector.extract_strided_slice %14 {offsets = [0, 128], sizes = [1, 128], strides = [1, 1]} : vector<1x384xf32> to vector<1x128xf32>
    %25 = arith.addf %23, %24 : vector<1x128xf32>
    %26 = arith.negf %25 : vector<1x128xf32>
    %27 = math.exp %26 : vector<1x128xf32>
    %cst_16 = arith.constant 1.000000e+00 : f32
    %28 = vector.broadcast %cst_16 : f32 to vector<1x128xf32>
    %29 = arith.addf %28, %27 : vector<1x128xf32>
    %30 = arith.divf %28, %29 : vector<1x128xf32>
    %31 = vector.extract_strided_slice %9 {offsets = [0, 256], sizes = [1, 128], strides = [1, 1]} : vector<1x384xf32> to vector<1x128xf32>
    %32 = vector.extract_strided_slice %14 {offsets = [0, 256], sizes = [1, 128], strides = [1, 1]} : vector<1x384xf32> to vector<1x128xf32>
    %33 = arith.mulf %22, %32 : vector<1x128xf32>
    %34 = arith.addf %31, %33 : vector<1x128xf32>
    %35 = math.tanh %34 : vector<1x128xf32>
    %cst_17 = arith.constant 1.000000e+00 : f32
    %36 = vector.broadcast %cst_17 : f32 to vector<1x128xf32>
    %37 = arith.subf %36, %30 : vector<1x128xf32>
    %38 = arith.mulf %37, %35 : vector<1x128xf32>
    %39 = arith.mulf %30, %7 : vector<1x128xf32>
    %40 = arith.addf %38, %39 : vector<1x128xf32>
    %41 = arith.index_cast %c0_i32 : i32 to index
    %c0_18 = arith.constant 0 : index
    %42 = vector.load %arg11[%41, %c0_18] : memref<8x128xf32, #tpu.memory_space<vmem>>, vector<1x128xf32>
    tpu.vector_store %arg11[%41, %c0_18], %40 {strides = array<i32>} : memref<8x128xf32, #tpu.memory_space<vmem>>, vector<1x128xf32>,
    %c1_i32 = arith.constant 1 : i32
    %43 = arith.index_cast %c1_i32 : i32 to index
    %c0_19 = arith.constant 0 : index
    %44 = vector.load %arg10[%43, %c0_19] : memref<8x384xf32, #tpu.memory_space<vmem>>, vector<1x384xf32>
    %45 = arith.truncf %40 : vector<1x128xf32> to vector<1x128xbf16>
    %c0_20 = arith.constant 0 : index
    %c0_21 = arith.constant 0 : index
    %46 = vector.load %arg2[%c0_20, %c0_21] : memref<128x384xbf16, #tpu.memory_space<vmem>>, vector<128x384xbf16>
    %cst_22 = arith.constant dense<0.000000e+00> : vector<1x384xf32>
    %47 = tpu.matmul %45, %46, %cst_22 {dimension_numbers = #tpu.dot_dimension_numbers<[1], [0], [0], [1], [0, 0, 1, 1], [], []>} : vector<1x128xbf16>, vector<128x384xbf16>, vector<1x384xf32> -> vector<1x384xf32>
    %c0_23 = arith.constant 0 : index
    %c0_24 = arith.constant 0 : index
    %48 = vector.load %arg4[%c0_23, %c0_24] : memref<1x384xf32, #tpu.memory_space<vmem>>, vector<1x384xf32>
    %49 = arith.addf %47, %48 : vector<1x384xf32>
    %50 = vector.extract_strided_slice %44 {offsets = [0, 0], sizes = [1, 128], strides = [1, 1]} : vector<1x384xf32> to vector<1x128xf32>
    %51 = vector.extract_strided_slice %49 {offsets = [0, 0], sizes = [1, 128], strides = [1, 1]} : vector<1x384xf32> to vector<1x128xf32>
    %52 = arith.addf %50, %51 : vector<1x128xf32>
    %53 = arith.negf %52 : vector<1x128xf32>
    %54 = math.exp %53 : vector<1x128xf32>
    %cst_25 = arith.constant 1.000000e+00 : f32
    %55 = vector.broadcast %cst_25 : f32 to vector<1x128xf32>
    %56 = arith.addf %55, %54 : vector<1x128xf32>
    %57 = arith.divf %55, %56 : vector<1x128xf32>
    %58 = vector.extract_strided_slice %44 {offsets = [0, 128], sizes = [1, 128], strides = [1, 1]} : vector<1x384xf32> to vector<1x128xf32>
    %59 = vector.extract_strided_slice %49 {offsets = [0, 128], sizes = [1, 128], strides = [1, 1]} : vector<1x384xf32> to vector<1x128xf32>
    %60 = arith.addf %58, %59 : vector<1x128xf32>
    %61 = arith.negf %60 : vector<1x128xf32>
    %62 = math.exp %61 : vector<1x128xf32>
    %cst_26 = arith.constant 1.000000e+00 : f32
    %63 = vector.broadcast %cst_26 : f32 to vector<1x128xf32>
    %64 = arith.addf %63, %62 : vector<1x128xf32>
    %65 = arith.divf %63, %64 : vector<1x128xf32>
    %66 = vector.extract_strided_slice %44 {offsets = [0, 256], sizes = [1, 128], strides = [1, 1]} : vector<1x384xf32> to vector<1x128xf32>
    %67 = vector.extract_strided_slice %49 {offsets = [0, 256], sizes = [1, 128], strides = [1, 1]} : vector<1x384xf32> to vector<1x128xf32>
    %68 = arith.mulf %57, %67 : vector<1x128xf32>
    %69 = arith.addf %66, %68 : vector<1x128xf32>
    %70 = math.tanh %69 : vector<1x128xf32>
    %cst_27 = arith.constant 1.000000e+00 : f32
    %71 = vector.broadcast %cst_27 : f32 to vector<1x128xf32>
    %72 = arith.subf %71, %65 : vector<1x128xf32>
    %73 = arith.mulf %72, %70 : vector<1x128xf32>
    %74 = arith.mulf %65, %40 : vector<1x128xf32>
    %75 = arith.addf %73, %74 : vector<1x128xf32>
    %76 = arith.index_cast %c1_i32 : i32 to index
    %c0_28 = arith.constant 0 : index
    %77 = vector.load %arg11[%76, %c0_28] : memref<8x128xf32, #tpu.memory_space<vmem>>, vector<1x128xf32>
    tpu.vector_store %arg11[%76, %c0_28], %75 {strides = array<i32>} : memref<8x128xf32, #tpu.memory_space<vmem>>, vector<1x128xf32>,
    %c2_i32 = arith.constant 2 : i32
    %78 = arith.index_cast %c2_i32 : i32 to index
    %c0_29 = arith.constant 0 : index
    %79 = vector.load %arg10[%78, %c0_29] : memref<8x384xf32, #tpu.memory_space<vmem>>, vector<1x384xf32>
    %80 = arith.truncf %75 : vector<1x128xf32> to vector<1x128xbf16>
    %c0_30 = arith.constant 0 : index
    %c0_31 = arith.constant 0 : index
    %81 = vector.load %arg2[%c0_30, %c0_31] : memref<128x384xbf16, #tpu.memory_space<vmem>>, vector<128x384xbf16>
    %cst_32 = arith.constant dense<0.000000e+00> : vector<1x384xf32>
    %82 = tpu.matmul %80, %81, %cst_32 {dimension_numbers = #tpu.dot_dimension_numbers<[1], [0], [0], [1], [0, 0, 1, 1], [], []>} : vector<1x128xbf16>, vector<128x384xbf16>, vector<1x384xf32> -> vector<1x384xf32>
    %c0_33 = arith.constant 0 : index
    %c0_34 = arith.constant 0 : index
    %83 = vector.load %arg4[%c0_33, %c0_34] : memref<1x384xf32, #tpu.memory_space<vmem>>, vector<1x384xf32>
    %84 = arith.addf %82, %83 : vector<1x384xf32>
    %85 = vector.extract_strided_slice %79 {offsets = [0, 0], sizes = [1, 128], strides = [1, 1]} : vector<1x384xf32> to vector<1x128xf32>
    %86 = vector.extract_strided_slice %84 {offsets = [0, 0], sizes = [1, 128], strides = [1, 1]} : vector<1x384xf32> to vector<1x128xf32>
    %87 = arith.addf %85, %86 : vector<1x128xf32>
    %88 = arith.negf %87 : vector<1x128xf32>
    %89 = math.exp %88 : vector<1x128xf32>
    %cst_35 = arith.constant 1.000000e+00 : f32
    %90 = vector.broadcast %cst_35 : f32 to vector<1x128xf32>
    %91 = arith.addf %90, %89 : vector<1x128xf32>
    %92 = arith.divf %90, %91 : vector<1x128xf32>
    %93 = vector.extract_strided_slice %79 {offsets = [0, 128], sizes = [1, 128], strides = [1, 1]} : vector<1x384xf32> to vector<1x128xf32>
    %94 = vector.extract_strided_slice %84 {offsets = [0, 128], sizes = [1, 128], strides = [1, 1]} : vector<1x384xf32> to vector<1x128xf32>
    %95 = arith.addf %93, %94 : vector<1x128xf32>
    %96 = arith.negf %95 : vector<1x128xf32>
    %97 = math.exp %96 : vector<1x128xf32>
    %cst_36 = arith.constant 1.000000e+00 : f32
    %98 = vector.broadcast %cst_36 : f32 to vector<1x128xf32>
    %99 = arith.addf %98, %97 : vector<1x128xf32>
    %100 = arith.divf %98, %99 : vector<1x128xf32>
    %101 = vector.extract_strided_slice %79 {offsets = [0, 256], sizes = [1, 128], strides = [1, 1]} : vector<1x384xf32> to vector<1x128xf32>
    %102 = vector.extract_strided_slice %84 {offsets = [0, 256], sizes = [1, 128], strides = [1, 1]} : vector<1x384xf32> to vector<1x128xf32>
    %103 = arith.mulf %92, %102 : vector<1x128xf32>
    %104 = arith.addf %101, %103 : vector<1x128xf32>
    %105 = math.tanh %104 : vector<1x128xf32>
    %cst_37 = arith.constant 1.000000e+00 : f32
    %106 = vector.broadcast %cst_37 : f32 to vector<1x128xf32>
    %107 = arith.subf %106, %100 : vector<1x128xf32>
    %108 = arith.mulf %107, %105 : vector<1x128xf32>
    %109 = arith.mulf %100, %75 : vector<1x128xf32>
    %110 = arith.addf %108, %109 : vector<1x128xf32>
    %111 = arith.index_cast %c2_i32 : i32 to index
    %c0_38 = arith.constant 0 : index
    %112 = vector.load %arg11[%111, %c0_38] : memref<8x128xf32, #tpu.memory_space<vmem>>, vector<1x128xf32>
    tpu.vector_store %arg11[%111, %c0_38], %110 {strides = array<i32>} : memref<8x128xf32, #tpu.memory_space<vmem>>, vector<1x128xf32>,
    %c3_i32 = arith.constant 3 : i32
    %113 = arith.index_cast %c3_i32 : i32 to index
    %c0_39 = arith.constant 0 : index
    %114 = vector.load %arg10[%113, %c0_39] : memref<8x384xf32, #tpu.memory_space<vmem>>, vector<1x384xf32>
    %115 = arith.truncf %110 : vector<1x128xf32> to vector<1x128xbf16>
    %c0_40 = arith.constant 0 : index
    %c0_41 = arith.constant 0 : index
    %116 = vector.load %arg2[%c0_40, %c0_41] : memref<128x384xbf16, #tpu.memory_space<vmem>>, vector<128x384xbf16>
    %cst_42 = arith.constant dense<0.000000e+00> : vector<1x384xf32>
    %117 = tpu.matmul %115, %116, %cst_42 {dimension_numbers = #tpu.dot_dimension_numbers<[1], [0], [0], [1], [0, 0, 1, 1], [], []>} : vector<1x128xbf16>, vector<128x384xbf16>, vector<1x384xf32> -> vector<1x384xf32>
    %c0_43 = arith.constant 0 : index
    %c0_44 = arith.constant 0 : index
    %118 = vector.load %arg4[%c0_43, %c0_44] : memref<1x384xf32, #tpu.memory_space<vmem>>, vector<1x384xf32>
    %119 = arith.addf %117, %118 : vector<1x384xf32>
    %120 = vector.extract_strided_slice %114 {offsets = [0, 0], sizes = [1, 128], strides = [1, 1]} : vector<1x384xf32> to vector<1x128xf32>
    %121 = vector.extract_strided_slice %119 {offsets = [0, 0], sizes = [1, 128], strides = [1, 1]} : vector<1x384xf32> to vector<1x128xf32>
    %122 = arith.addf %120, %121 : vector<1x128xf32>
    %123 = arith.negf %122 : vector<1x128xf32>
    %124 = math.exp %123 : vector<1x128xf32>
    %cst_45 = arith.constant 1.000000e+00 : f32
    %125 = vector.broadcast %cst_45 : f32 to vector<1x128xf32>
    %126 = arith.addf %125, %124 : vector<1x128xf32>
    %127 = arith.divf %125, %126 : vector<1x128xf32>
    %128 = vector.extract_strided_slice %114 {offsets = [0, 128], sizes = [1, 128], strides = [1, 1]} : vector<1x384xf32> to vector<1x128xf32>
    %129 = vector.extract_strided_slice %119 {offsets = [0, 128], sizes = [1, 128], strides = [1, 1]} : vector<1x384xf32> to vector<1x128xf32>
    %130 = arith.addf %128, %129 : vector<1x128xf32>
    %131 = arith.negf %130 : vector<1x128xf32>
    %132 = math.exp %131 : vector<1x128xf32>
    %cst_46 = arith.constant 1.000000e+00 : f32
    %133 = vector.broadcast %cst_46 : f32 to vector<1x128xf32>
    %134 = arith.addf %133, %132 : vector<1x128xf32>
    %135 = arith.divf %133, %134 : vector<1x128xf32>
    %136 = vector.extract_strided_slice %114 {offsets = [0, 256], sizes = [1, 128], strides = [1, 1]} : vector<1x384xf32> to vector<1x128xf32>
    %137 = vector.extract_strided_slice %119 {offsets = [0, 256], sizes = [1, 128], strides = [1, 1]} : vector<1x384xf32> to vector<1x128xf32>
    %138 = arith.mulf %127, %137 : vector<1x128xf32>
    %139 = arith.addf %136, %138 : vector<1x128xf32>
    %140 = math.tanh %139 : vector<1x128xf32>
    %cst_47 = arith.constant 1.000000e+00 : f32
    %141 = vector.broadcast %cst_47 : f32 to vector<1x128xf32>
    %142 = arith.subf %141, %135 : vector<1x128xf32>
    %143 = arith.mulf %142, %140 : vector<1x128xf32>
    %144 = arith.mulf %135, %110 : vector<1x128xf32>
    %145 = arith.addf %143, %144 : vector<1x128xf32>
    %146 = arith.index_cast %c3_i32 : i32 to index
    %c0_48 = arith.constant 0 : index
    %147 = vector.load %arg11[%146, %c0_48] : memref<8x128xf32, #tpu.memory_space<vmem>>, vector<1x128xf32>
    tpu.vector_store %arg11[%146, %c0_48], %145 {strides = array<i32>} : memref<8x128xf32, #tpu.memory_space<vmem>>, vector<1x128xf32>,
    %c4_i32 = arith.constant 4 : i32
    %148 = arith.index_cast %c4_i32 : i32 to index
    %c0_49 = arith.constant 0 : index
    %149 = vector.load %arg10[%148, %c0_49] : memref<8x384xf32, #tpu.memory_space<vmem>>, vector<1x384xf32>
    %150 = arith.truncf %145 : vector<1x128xf32> to vector<1x128xbf16>
    %c0_50 = arith.constant 0 : index
    %c0_51 = arith.constant 0 : index
    %151 = vector.load %arg2[%c0_50, %c0_51] : memref<128x384xbf16, #tpu.memory_space<vmem>>, vector<128x384xbf16>
    %cst_52 = arith.constant dense<0.000000e+00> : vector<1x384xf32>
    %152 = tpu.matmul %150, %151, %cst_52 {dimension_numbers = #tpu.dot_dimension_numbers<[1], [0], [0], [1], [0, 0, 1, 1], [], []>} : vector<1x128xbf16>, vector<128x384xbf16>, vector<1x384xf32> -> vector<1x384xf32>
    %c0_53 = arith.constant 0 : index
    %c0_54 = arith.constant 0 : index
    %153 = vector.load %arg4[%c0_53, %c0_54] : memref<1x384xf32, #tpu.memory_space<vmem>>, vector<1x384xf32>
    %154 = arith.addf %152, %153 : vector<1x384xf32>
    %155 = vector.extract_strided_slice %149 {offsets = [0, 0], sizes = [1, 128], strides = [1, 1]} : vector<1x384xf32> to vector<1x128xf32>
    %156 = vector.extract_strided_slice %154 {offsets = [0, 0], sizes = [1, 128], strides = [1, 1]} : vector<1x384xf32> to vector<1x128xf32>
    %157 = arith.addf %155, %156 : vector<1x128xf32>
    %158 = arith.negf %157 : vector<1x128xf32>
    %159 = math.exp %158 : vector<1x128xf32>
    %cst_55 = arith.constant 1.000000e+00 : f32
    %160 = vector.broadcast %cst_55 : f32 to vector<1x128xf32>
    %161 = arith.addf %160, %159 : vector<1x128xf32>
    %162 = arith.divf %160, %161 : vector<1x128xf32>
    %163 = vector.extract_strided_slice %149 {offsets = [0, 128], sizes = [1, 128], strides = [1, 1]} : vector<1x384xf32> to vector<1x128xf32>
    %164 = vector.extract_strided_slice %154 {offsets = [0, 128], sizes = [1, 128], strides = [1, 1]} : vector<1x384xf32> to vector<1x128xf32>
    %165 = arith.addf %163, %164 : vector<1x128xf32>
    %166 = arith.negf %165 : vector<1x128xf32>
    %167 = math.exp %166 : vector<1x128xf32>
    %cst_56 = arith.constant 1.000000e+00 : f32
    %168 = vector.broadcast %cst_56 : f32 to vector<1x128xf32>
    %169 = arith.addf %168, %167 : vector<1x128xf32>
    %170 = arith.divf %168, %169 : vector<1x128xf32>
    %171 = vector.extract_strided_slice %149 {offsets = [0, 256], sizes = [1, 128], strides = [1, 1]} : vector<1x384xf32> to vector<1x128xf32>
    %172 = vector.extract_strided_slice %154 {offsets = [0, 256], sizes = [1, 128], strides = [1, 1]} : vector<1x384xf32> to vector<1x128xf32>
    %173 = arith.mulf %162, %172 : vector<1x128xf32>
    %174 = arith.addf %171, %173 : vector<1x128xf32>
    %175 = math.tanh %174 : vector<1x128xf32>
    %cst_57 = arith.constant 1.000000e+00 : f32
    %176 = vector.broadcast %cst_57 : f32 to vector<1x128xf32>
    %177 = arith.subf %176, %170 : vector<1x128xf32>
    %178 = arith.mulf %177, %175 : vector<1x128xf32>
    %179 = arith.mulf %170, %145 : vector<1x128xf32>
    %180 = arith.addf %178, %179 : vector<1x128xf32>
    %181 = arith.index_cast %c4_i32 : i32 to index
    %c0_58 = arith.constant 0 : index
    %182 = vector.load %arg11[%181, %c0_58] : memref<8x128xf32, #tpu.memory_space<vmem>>, vector<1x128xf32>
    tpu.vector_store %arg11[%181, %c0_58], %180 {strides = array<i32>} : memref<8x128xf32, #tpu.memory_space<vmem>>, vector<1x128xf32>,
    %c5_i32 = arith.constant 5 : i32
    %183 = arith.index_cast %c5_i32 : i32 to index
    %c0_59 = arith.constant 0 : index
    %184 = vector.load %arg10[%183, %c0_59] : memref<8x384xf32, #tpu.memory_space<vmem>>, vector<1x384xf32>
    %185 = arith.truncf %180 : vector<1x128xf32> to vector<1x128xbf16>
    %c0_60 = arith.constant 0 : index
    %c0_61 = arith.constant 0 : index
    %186 = vector.load %arg2[%c0_60, %c0_61] : memref<128x384xbf16, #tpu.memory_space<vmem>>, vector<128x384xbf16>
    %cst_62 = arith.constant dense<0.000000e+00> : vector<1x384xf32>
    %187 = tpu.matmul %185, %186, %cst_62 {dimension_numbers = #tpu.dot_dimension_numbers<[1], [0], [0], [1], [0, 0, 1, 1], [], []>} : vector<1x128xbf16>, vector<128x384xbf16>, vector<1x384xf32> -> vector<1x384xf32>
    %c0_63 = arith.constant 0 : index
    %c0_64 = arith.constant 0 : index
    %188 = vector.load %arg4[%c0_63, %c0_64] : memref<1x384xf32, #tpu.memory_space<vmem>>, vector<1x384xf32>
    %189 = arith.addf %187, %188 : vector<1x384xf32>
    %190 = vector.extract_strided_slice %184 {offsets = [0, 0], sizes = [1, 128], strides = [1, 1]} : vector<1x384xf32> to vector<1x128xf32>
    %191 = vector.extract_strided_slice %189 {offsets = [0, 0], sizes = [1, 128], strides = [1, 1]} : vector<1x384xf32> to vector<1x128xf32>
    %192 = arith.addf %190, %191 : vector<1x128xf32>
    %193 = arith.negf %192 : vector<1x128xf32>
    %194 = math.exp %193 : vector<1x128xf32>
    %cst_65 = arith.constant 1.000000e+00 : f32
    %195 = vector.broadcast %cst_65 : f32 to vector<1x128xf32>
    %196 = arith.addf %195, %194 : vector<1x128xf32>
    %197 = arith.divf %195, %196 : vector<1x128xf32>
    %198 = vector.extract_strided_slice %184 {offsets = [0, 128], sizes = [1, 128], strides = [1, 1]} : vector<1x384xf32> to vector<1x128xf32>
    %199 = vector.extract_strided_slice %189 {offsets = [0, 128], sizes = [1, 128], strides = [1, 1]} : vector<1x384xf32> to vector<1x128xf32>
    %200 = arith.addf %198, %199 : vector<1x128xf32>
    %201 = arith.negf %200 : vector<1x128xf32>
    %202 = math.exp %201 : vector<1x128xf32>
    %cst_66 = arith.constant 1.000000e+00 : f32
    %203 = vector.broadcast %cst_66 : f32 to vector<1x128xf32>
    %204 = arith.addf %203, %202 : vector<1x128xf32>
    %205 = arith.divf %203, %204 : vector<1x128xf32>
    %206 = vector.extract_strided_slice %184 {offsets = [0, 256], sizes = [1, 128], strides = [1, 1]} : vector<1x384xf32> to vector<1x128xf32>
    %207 = vector.extract_strided_slice %189 {offsets = [0, 256], sizes = [1, 128], strides = [1, 1]} : vector<1x384xf32> to vector<1x128xf32>
    %208 = arith.mulf %197, %207 : vector<1x128xf32>
    %209 = arith.addf %206, %208 : vector<1x128xf32>
    %210 = math.tanh %209 : vector<1x128xf32>
    %cst_67 = arith.constant 1.000000e+00 : f32
    %211 = vector.broadcast %cst_67 : f32 to vector<1x128xf32>
    %212 = arith.subf %211, %205 : vector<1x128xf32>
    %213 = arith.mulf %212, %210 : vector<1x128xf32>
    %214 = arith.mulf %205, %180 : vector<1x128xf32>
    %215 = arith.addf %213, %214 : vector<1x128xf32>
    %216 = arith.index_cast %c5_i32 : i32 to index
    %c0_68 = arith.constant 0 : index
    %217 = vector.load %arg11[%216, %c0_68] : memref<8x128xf32, #tpu.memory_space<vmem>>, vector<1x128xf32>
    tpu.vector_store %arg11[%216, %c0_68], %215 {strides = array<i32>} : memref<8x128xf32, #tpu.memory_space<vmem>>, vector<1x128xf32>,
    %c6_i32 = arith.constant 6 : i32
    %218 = arith.index_cast %c6_i32 : i32 to index
    %c0_69 = arith.constant 0 : index
    %219 = vector.load %arg10[%218, %c0_69] : memref<8x384xf32, #tpu.memory_space<vmem>>, vector<1x384xf32>
    %220 = arith.truncf %215 : vector<1x128xf32> to vector<1x128xbf16>
    %c0_70 = arith.constant 0 : index
    %c0_71 = arith.constant 0 : index
    %221 = vector.load %arg2[%c0_70, %c0_71] : memref<128x384xbf16, #tpu.memory_space<vmem>>, vector<128x384xbf16>
    %cst_72 = arith.constant dense<0.000000e+00> : vector<1x384xf32>
    %222 = tpu.matmul %220, %221, %cst_72 {dimension_numbers = #tpu.dot_dimension_numbers<[1], [0], [0], [1], [0, 0, 1, 1], [], []>} : vector<1x128xbf16>, vector<128x384xbf16>, vector<1x384xf32> -> vector<1x384xf32>
    %c0_73 = arith.constant 0 : index
    %c0_74 = arith.constant 0 : index
    %223 = vector.load %arg4[%c0_73, %c0_74] : memref<1x384xf32, #tpu.memory_space<vmem>>, vector<1x384xf32>
    %224 = arith.addf %222, %223 : vector<1x384xf32>
    %225 = vector.extract_strided_slice %219 {offsets = [0, 0], sizes = [1, 128], strides = [1, 1]} : vector<1x384xf32> to vector<1x128xf32>
    %226 = vector.extract_strided_slice %224 {offsets = [0, 0], sizes = [1, 128], strides = [1, 1]} : vector<1x384xf32> to vector<1x128xf32>
    %227 = arith.addf %225, %226 : vector<1x128xf32>
    %228 = arith.negf %227 : vector<1x128xf32>
    %229 = math.exp %228 : vector<1x128xf32>
    %cst_75 = arith.constant 1.000000e+00 : f32
    %230 = vector.broadcast %cst_75 : f32 to vector<1x128xf32>
    %231 = arith.addf %230, %229 : vector<1x128xf32>
    %232 = arith.divf %230, %231 : vector<1x128xf32>
    %233 = vector.extract_strided_slice %219 {offsets = [0, 128], sizes = [1, 128], strides = [1, 1]} : vector<1x384xf32> to vector<1x128xf32>
    %234 = vector.extract_strided_slice %224 {offsets = [0, 128], sizes = [1, 128], strides = [1, 1]} : vector<1x384xf32> to vector<1x128xf32>
    %235 = arith.addf %233, %234 : vector<1x128xf32>
    %236 = arith.negf %235 : vector<1x128xf32>
    %237 = math.exp %236 : vector<1x128xf32>
    %cst_76 = arith.constant 1.000000e+00 : f32
    %238 = vector.broadcast %cst_76 : f32 to vector<1x128xf32>
    %239 = arith.addf %238, %237 : vector<1x128xf32>
    %240 = arith.divf %238, %239 : vector<1x128xf32>
    %241 = vector.extract_strided_slice %219 {offsets = [0, 256], sizes = [1, 128], strides = [1, 1]} : vector<1x384xf32> to vector<1x128xf32>
    %242 = vector.extract_strided_slice %224 {offsets = [0, 256], sizes = [1, 128], strides = [1, 1]} : vector<1x384xf32> to vector<1x128xf32>
    %243 = arith.mulf %232, %242 : vector<1x128xf32>
    %244 = arith.addf %241, %243 : vector<1x128xf32>
    %245 = math.tanh %244 : vector<1x128xf32>
    %cst_77 = arith.constant 1.000000e+00 : f32
    %246 = vector.broadcast %cst_77 : f32 to vector<1x128xf32>
    %247 = arith.subf %246, %240 : vector<1x128xf32>
    %248 = arith.mulf %247, %245 : vector<1x128xf32>
    %249 = arith.mulf %240, %215 : vector<1x128xf32>
    %250 = arith.addf %248, %249 : vector<1x128xf32>
    %251 = arith.index_cast %c6_i32 : i32 to index
    %c0_78 = arith.constant 0 : index
    %252 = vector.load %arg11[%251, %c0_78] : memref<8x128xf32, #tpu.memory_space<vmem>>, vector<1x128xf32>
    tpu.vector_store %arg11[%251, %c0_78], %250 {strides = array<i32>} : memref<8x128xf32, #tpu.memory_space<vmem>>, vector<1x128xf32>,
    %c7_i32 = arith.constant 7 : i32
    %253 = arith.index_cast %c7_i32 : i32 to index
    %c0_79 = arith.constant 0 : index
    %254 = vector.load %arg10[%253, %c0_79] : memref<8x384xf32, #tpu.memory_space<vmem>>, vector<1x384xf32>
    %255 = arith.truncf %250 : vector<1x128xf32> to vector<1x128xbf16>
    %c0_80 = arith.constant 0 : index
    %c0_81 = arith.constant 0 : index
    %256 = vector.load %arg2[%c0_80, %c0_81] : memref<128x384xbf16, #tpu.memory_space<vmem>>, vector<128x384xbf16>
    %cst_82 = arith.constant dense<0.000000e+00> : vector<1x384xf32>
    %257 = tpu.matmul %255, %256, %cst_82 {dimension_numbers = #tpu.dot_dimension_numbers<[1], [0], [0], [1], [0, 0, 1, 1], [], []>} : vector<1x128xbf16>, vector<128x384xbf16>, vector<1x384xf32> -> vector<1x384xf32>
    %c0_83 = arith.constant 0 : index
    %c0_84 = arith.constant 0 : index
    %258 = vector.load %arg4[%c0_83, %c0_84] : memref<1x384xf32, #tpu.memory_space<vmem>>, vector<1x384xf32>
    %259 = arith.addf %257, %258 : vector<1x384xf32>
    %260 = vector.extract_strided_slice %254 {offsets = [0, 0], sizes = [1, 128], strides = [1, 1]} : vector<1x384xf32> to vector<1x128xf32>
    %261 = vector.extract_strided_slice %259 {offsets = [0, 0], sizes = [1, 128], strides = [1, 1]} : vector<1x384xf32> to vector<1x128xf32>
    %262 = arith.addf %260, %261 : vector<1x128xf32>
    %263 = arith.negf %262 : vector<1x128xf32>
    %264 = math.exp %263 : vector<1x128xf32>
    %cst_85 = arith.constant 1.000000e+00 : f32
    %265 = vector.broadcast %cst_85 : f32 to vector<1x128xf32>
    %266 = arith.addf %265, %264 : vector<1x128xf32>
    %267 = arith.divf %265, %266 : vector<1x128xf32>
    %268 = vector.extract_strided_slice %254 {offsets = [0, 128], sizes = [1, 128], strides = [1, 1]} : vector<1x384xf32> to vector<1x128xf32>
    %269 = vector.extract_strided_slice %259 {offsets = [0, 128], sizes = [1, 128], strides = [1, 1]} : vector<1x384xf32> to vector<1x128xf32>
    %270 = arith.addf %268, %269 : vector<1x128xf32>
    %271 = arith.negf %270 : vector<1x128xf32>
    %272 = math.exp %271 : vector<1x128xf32>
    %cst_86 = arith.constant 1.000000e+00 : f32
    %273 = vector.broadcast %cst_86 : f32 to vector<1x128xf32>
    %274 = arith.addf %273, %272 : vector<1x128xf32>
    %275 = arith.divf %273, %274 : vector<1x128xf32>
    %276 = vector.extract_strided_slice %254 {offsets = [0, 256], sizes = [1, 128], strides = [1, 1]} : vector<1x384xf32> to vector<1x128xf32>
    %277 = vector.extract_strided_slice %259 {offsets = [0, 256], sizes = [1, 128], strides = [1, 1]} : vector<1x384xf32> to vector<1x128xf32>
    %278 = arith.mulf %267, %277 : vector<1x128xf32>
    %279 = arith.addf %276, %278 : vector<1x128xf32>
    %280 = math.tanh %279 : vector<1x128xf32>
    %cst_87 = arith.constant 1.000000e+00 : f32
    %281 = vector.broadcast %cst_87 : f32 to vector<1x128xf32>
    %282 = arith.subf %281, %275 : vector<1x128xf32>
    %283 = arith.mulf %282, %280 : vector<1x128xf32>
    %284 = arith.mulf %275, %250 : vector<1x128xf32>
    %285 = arith.addf %283, %284 : vector<1x128xf32>
    %286 = arith.index_cast %c7_i32 : i32 to index
    %c0_88 = arith.constant 0 : index
    %287 = vector.load %arg11[%286, %c0_88] : memref<8x128xf32, #tpu.memory_space<vmem>>, vector<1x128xf32>
    tpu.vector_store %arg11[%286, %c0_88], %285 {strides = array<i32>} : memref<8x128xf32, #tpu.memory_space<vmem>>, vector<1x128xf32>,
    %c8_i32 = arith.constant 8 : i32
    %c0_89 = arith.constant 0 : index
    %c0_90 = arith.constant 0 : index
    %288 = vector.load %arg11[%c0_89, %c0_90] : memref<8x128xf32, #tpu.memory_space<vmem>>, vector<8x128xf32>
    %c0_91 = arith.constant 0 : index
    %c0_92 = arith.constant 0 : index
    %289 = vector.load %arg9[%c0_91, %c0_92] : memref<8x128xf32, #tpu.memory_space<vmem>>, vector<8x128xf32>
    tpu.vector_store %arg9[%c0_91, %c0_92], %288 {strides = array<i32>} : memref<8x128xf32, #tpu.memory_space<vmem>>, vector<8x128xf32>,
    %c0_93 = arith.constant 0 : index
    %c0_94 = arith.constant 0 : index
    %290 = vector.load %arg11[%c0_93, %c0_94] : memref<8x128xf32, #tpu.memory_space<vmem>>, vector<8x128xf32>
    %291 = arith.truncf %290 : vector<8x128xf32> to vector<8x128xbf16>
    %c0_95 = arith.constant 0 : index
    %c0_96 = arith.constant 0 : index
    %292 = vector.load %arg5[%c0_95, %c0_96] : memref<128x256xbf16, #tpu.memory_space<vmem>>, vector<128x256xbf16>
    %cst_97 = arith.constant dense<0.000000e+00> : vector<8x256xf32>
    %293 = tpu.matmul %291, %292, %cst_97 {dimension_numbers = #tpu.dot_dimension_numbers<[1], [0], [0], [1], [0, 0, 1, 1], [], []>} : vector<8x128xbf16>, vector<128x256xbf16>, vector<8x256xf32> -> vector<8x256xf32>
    %c0_98 = arith.constant 0 : index
    %c0_99 = arith.constant 0 : index
    %294 = vector.load %arg6[%c0_98, %c0_99] : memref<1x256xf32, #tpu.memory_space<vmem>>, vector<1x256xf32>
    %295 = vector.broadcast %294 : vector<1x256xf32> to vector<8x256xf32>
    %296 = arith.addf %293, %295 : vector<8x256xf32>
    %cst_100 = arith.constant dense<0xFF800000> : vector<8xf32>
    %297 = vector.multi_reduction <maximumf>, %296, %cst_100 [1] : vector<8x256xf32> to vector<8xf32>
    %298 = vector.shape_cast %297 : vector<8xf32> to vector<8x1xf32>
    %299 = vector.broadcast %298 : vector<8x1xf32> to vector<8x256xf32>
    %300 = arith.subf %296, %299 : vector<8x256xf32>
    %301 = math.exp %300 : vector<8x256xf32>
    %cst_101 = arith.constant dense<0.000000e+00> : vector<8xf32>
    %302 = vector.multi_reduction <add>, %301, %cst_101 [1] : vector<8x256xf32> to vector<8xf32>
    %303 = vector.shape_cast %302 : vector<8xf32> to vector<8x1xf32>
    %304 = math.log %303 : vector<8x1xf32>
    %305 = vector.broadcast %304 : vector<8x1xf32> to vector<8x256xf32>
    %306 = arith.subf %300, %305 : vector<8x256xf32>
    %c0_102 = arith.constant 0 : index
    %c0_103 = arith.constant 0 : index
    %307 = vector.load %arg8[%c0_102, %c0_103] : memref<8x256xf32, #tpu.memory_space<vmem>>, vector<8x256xf32>
    tpu.vector_store %arg8[%c0_102, %c0_103], %306 {strides = array<i32>} : memref<8x256xf32, #tpu.memory_space<vmem>>, vector<8x256xf32>,
    return
  }
}

</mosaic_0001>

<llo_original>
// kernel: tpu_custom_call.1
$region0: #{tpu_custom_call.1}
  #allocation0 [shape = 'u32[]', space=smem, size = 0x4, offset = 0x4, fixed_abs, tag = 'smem constant byte address 0x4 - core index']
  #allocation1 [shape = 'u32[144,128]{1,0:T(1,128)}', space=vmem, size = 0x12000, scoped, tag = 'internal scratch']
  #allocation2 [shape = 'f32[8,384]{1,0:T(8,128)}', space=vmem, size = 0x3000, scoped, tag = 'scratch operand']
  #allocation3 [shape = 'f32[8,128]{1,0:T(8,128)}', space=vmem, size = 0x1000, scoped, tag = 'scratch operand']
  %s0 = inlined_call_operand.hbm [shape: bf16[8,128], index: 0, kind: input, shape index: {}]
  %s1 = inlined_call_operand.hbm [shape: bf16[128,384], index: 1, kind: input, shape index: {}]
  %s2 = inlined_call_operand.hbm [shape: bf16[128,384], index: 2, kind: input, shape index: {}]
  %s3 = inlined_call_operand.vmem [shape: f32[1,384], index: 3, kind: input, shape index: {}]
  %s4 = inlined_call_operand.vmem [shape: f32[1,384], index: 4, kind: input, shape index: {}]
  %s5 = inlined_call_operand.hbm [shape: bf16[128,256], index: 5, kind: input, shape index: {}]
  %s6 = inlined_call_operand.vmem [shape: f32[1,256], index: 6, kind: input, shape index: {}]
  %s7 = inlined_call_operand.vmem [shape: f32[1,128], index: 7, kind: input, shape index: {}]
  %s8 = inlined_call_operand.hbm [shape: f32[8,256], index: 8, kind: output, shape index: {0}]
  %s9 = inlined_call_operand.hbm [shape: f32[8,128], index: 9, kind: output, shape index: {1}]
  %10 = xla_tuple %s8, %s9
  %s11 = sld [smem:[#allocation0]]
  $region66: #{tpu_custom_call.1} parent=0
    _
  %s13 = ssub.s32 1, %s11
  %s14 = scalar_select 0, %s13, %s11
  $region1: #{tpu_custom_call.1} parent=0
    #allocation4 [shape = 'u8[2048]{0}', space=vmem, size = 0x800, scoped, tag = 'input window, operand 0, single buffered']
    #allocation5 [shape = 's32[1]{0}', space=sflag, size = 0x4, scoped, tag = 'scoped memory for tpu_custom_call.1']
    #allocation6 [shape = 's32[1]{0}', space=sflag, size = 0x4, scoped, tag = 'scoped memory for tpu_custom_call.1']
    #allocation7 [shape = 'u8[98304]{0}', space=vmem, size = 0x18000, scoped, tag = 'input window, operand 1, single buffered']
    #allocation8 [shape = 's32[1]{0}', space=sflag, size = 0x4, scoped, tag = 'scoped memory for tpu_custom_call.1']
    #allocation9 [shape = 'u8[98304]{0}', space=vmem, size = 0x18000, scoped, tag = 'input window, operand 2, single buffered']
    #allocation10 [shape = 'u8[65536]{0}', space=vmem, size = 0x10000, scoped, tag = 'input window, operand 5, single buffered']
    #allocation11 [shape = 's32[1]{0}', space=sflag, size = 0x4, scoped, tag = 'scoped memory for tpu_custom_call.1']
    #allocation12 [shape = 'u8[8192]{0}', space=vmem, size = 0x2000, scoped, tag = 'output window, operand 0, single buffered']
    #allocation13 [shape = 'u8[4096]{0}', space=vmem, size = 0x1000, scoped, tag = 'output window, operand 1, single buffered']
    #allocation14 [shape = 's32[1]{0}', space=sflag, size = 0x4, scoped, tag = 'scoped memory for tpu_custom_call.1']
    %15 = vsyncpa [#allocation5], 0
    %16 = vsyncpa [#allocation8], 0
    %17 = vsyncpa [#allocation11], 0
    %18 = vsyncpa [#allocation6], 0
    %19 = vsyncpa [#allocation14], 0
    // Predicated region
    $region2: #{tpu_custom_call.1} parent=1 // pred_check
      _
    $region3: #{tpu_custom_call.1} parent=1 // pred_check_branch
      %21 = sbr.rel (0) target = $region5
    $region4: #{tpu_custom_call.1} parent=1 // pred_region
      %s23 = ssub.s32 64, 64
      %24 = vsyncadd [#allocation5], %s23
      %s26 = sshll.u32 [#allocation4], 4
      %s27 = int_to_ptr.vmem [resolvable:$true] %s26
      %29 = dma.hbm_to_vmem [thread:$0]  %s0, 64, %s27, [#allocation5]
    $region5: #{tpu_custom_call.1} parent=1 // pred_fallthru
      _
    // Predicated region
    $region6: #{tpu_custom_call.1} parent=1 // pred_check
      _
    $region7: #{tpu_custom_call.1} parent=1 // pred_check_branch
      %31 = sbr.rel (0) target = $region9
    $region8: #{tpu_custom_call.1} parent=1 // pred_region
      %s33 = ssub.s32 3072, 3072
      %34 = vsyncadd [#allocation8], %s33
      %s35 = sshll.u32 [#allocation7], 4
      %s36 = int_to_ptr.vmem [resolvable:$true] %s35
      %41 = dma.hbm_to_vmem [thread:$0]  %s1, 3072, %s36, [#allocation8], 192, 192, 12
    $region9: #{tpu_custom_call.1} parent=1 // pred_fallthru
      _
    // Predicated region
    $region10: #{tpu_custom_call.1} parent=1 // pred_check
      _
    $region11: #{tpu_custom_call.1} parent=1 // pred_check_branch
      %43 = sbr.rel (0) target = $region13
    $region12: #{tpu_custom_call.1} parent=1 // pred_region
      %s45 = ssub.s32 3072, 3072
      %46 = vsyncadd [#allocation8], %s45
      %s47 = sshll.u32 [#allocation9], 4
      %s48 = int_to_ptr.vmem [resolvable:$true] %s47
      %53 = dma.hbm_to_vmem [thread:$0]  %s2, 3072, %s48, [#allocation8], 192, 192, 12
    $region13: #{tpu_custom_call.1} parent=1 // pred_fallthru
      _
    // Predicated region
    $region14: #{tpu_custom_call.1} parent=1 // pred_check
      _
    $region15: #{tpu_custom_call.1} parent=1 // pred_check_branch
      %55 = sbr.rel (0) target = $region17
    $region16: #{tpu_custom_call.1} parent=1 // pred_region
      _
    $region17: #{tpu_custom_call.1} parent=1 // pred_fallthru
      _
    // Predicated region
    $region18: #{tpu_custom_call.1} parent=1 // pred_check
      _
    $region19: #{tpu_custom_call.1} parent=1 // pred_check_branch
      %57 = sbr.rel (0) target = $region21
    $region20: #{tpu_custom_call.1} parent=1 // pred_region
      _
    $region21: #{tpu_custom_call.1} parent=1 // pred_fallthru
      _
    // Predicated region
    $region22: #{tpu_custom_call.1} parent=1 // pred_check
      _
    $region23: #{tpu_custom_call.1} parent=1 // pred_check_branch
      %59 = sbr.rel (0) target = $region25
    $region24: #{tpu_custom_call.1} parent=1 // pred_region
      %s61 = ssub.s32 2048, 2048
      %62 = vsyncadd [#allocation11], %s61
      %s63 = sshll.u32 [#allocation10], 4
      %s64 = int_to_ptr.vmem [resolvable:$true] %s63
      %69 = dma.hbm_to_vmem [thread:$0]  %s5, 2048, %s64, [#allocation11], 128, 128, 8
    $region25: #{tpu_custom_call.1} parent=1 // pred_fallthru
      _
    // Predicated region
    $region26: #{tpu_custom_call.1} parent=1 // pred_check
      _
    $region27: #{tpu_custom_call.1} parent=1 // pred_check_branch
      %71 = sbr.rel (0) target = $region29
    $region28: #{tpu_custom_call.1} parent=1 // pred_region
      _
    $region29: #{tpu_custom_call.1} parent=1 // pred_fallthru
      _
    // Predicated region
    $region30: #{tpu_custom_call.1} parent=1 // pred_check
      _
    $region31: #{tpu_custom_call.1} parent=1 // pred_check_branch
      %73 = sbr.rel (0) target = $region33
    $region32: #{tpu_custom_call.1} parent=1 // pred_region
      _
    $region33: #{tpu_custom_call.1} parent=1 // pred_fallthru
      _
    // Predicated region
    $region34: #{tpu_custom_call.1} parent=1 // pred_check
      _
    $region35: #{tpu_custom_call.1} parent=1 // pred_check_branch
      %75 = sbr.rel (0) target = $region37
    $region36: #{tpu_custom_call.1} parent=1 // pred_region
      %76 = dma.done [#allocation5], 64
    $region37: #{tpu_custom_call.1} parent=1 // pred_fallthru
      _
    // Predicated region
    $region38: #{tpu_custom_call.1} parent=1 // pred_check
      _
    $region39: #{tpu_custom_call.1} parent=1 // pred_check_branch
      %78 = sbr.rel (0) target = $region41
    $region40: #{tpu_custom_call.1} parent=1 // pred_region
      %79 = dma.done [#allocation8], 3072
    $region41: #{tpu_custom_call.1} parent=1 // pred_fallthru
      _
    // Predicated region
    $region42: #{tpu_custom_call.1} parent=1 // pred_check
      _
    $region43: #{tpu_custom_call.1} parent=1 // pred_check_branch
      %81 = sbr.rel (0) target = $region45
    $region44: #{tpu_custom_call.1} parent=1 // pred_region
      %82 = dma.done [#allocation8], 3072
    $region45: #{tpu_custom_call.1} parent=1 // pred_fallthru
      _
    // Predicated region
    $region46: #{tpu_custom_call.1} parent=1 // pred_check
      _
    $region47: #{tpu_custom_call.1} parent=1 // pred_check_branch
      %84 = sbr.rel (0) target = $region49
    $region48: #{tpu_custom_call.1} parent=1 // pred_region
      %85 = dma.done [#allocation11], 2048
    $region49: #{tpu_custom_call.1} parent=1 // pred_fallthru
      _
    %v87 = vld [vmem:[#allocation4] sm:$0xf]
    %v88 = vld [vmem:[#allocation7] sm:$0xff]
    %v89 = vld [vmem:[#allocation7 + $0x8] sm:$0xf]
    %v90 = vld [vmem:[#allocation7 + $0xc] sm:$0xff]
    %v91 = vld [vmem:[#allocation7 + $0x14] sm:$0xf]
    %v92 = vld [vmem:[#allocation7 + $0x18] sm:$0xff]
    %v93 = vld [vmem:[#allocation7 + $0x20] sm:$0xf]
    %v94 = vld [vmem:[#allocation7 + $0x24] sm:$0xff]
    %v95 = vld [vmem:[#allocation7 + $0x2c] sm:$0xf]
    %v96 = vld [vmem:[#allocation7 + $0x30] sm:$0xff]
    %v97 = vld [vmem:[#allocation7 + $0x38] sm:$0xf]
    %v98 = vld [vmem:[#allocation7 + $0x3c] sm:$0xff]
    %v99 = vld [vmem:[#allocation7 + $0x44] sm:$0xf]
    %v100 = vld [vmem:[#allocation7 + $0x48] sm:$0xff]
    %v101 = vld [vmem:[#allocation7 + $0x50] sm:$0xf]
    %v102 = vld [vmem:[#allocation7 + $0x54] sm:$0xff]
    %v103 = vld [vmem:[#allocation7 + $0x5c] sm:$0xf]
    %v104 = vld [vmem:[#allocation7 + $0x60] sm:$0xff]
    %v105 = vld [vmem:[#allocation7 + $0x68] sm:$0xf]
    %v106 = vld [vmem:[#allocation7 + $0x6c] sm:$0xff]
    %v107 = vld [vmem:[#allocation7 + $0x74] sm:$0xf]
    %v108 = vld [vmem:[#allocation7 + $0x78] sm:$0xff]
    %v109 = vld [vmem:[#allocation7 + $0x80] sm:$0xf]
    %v110 = vld [vmem:[#allocation7 + $0x84] sm:$0xff]
    %v111 = vld [vmem:[#allocation7 + $0x8c] sm:$0xf]
    %v112 = vld [vmem:[#allocation7 + $0x90] sm:$0xff]
    %v113 = vld [vmem:[#allocation7 + $0x98] sm:$0xf]
    %v114 = vld [vmem:[#allocation7 + $0x9c] sm:$0xff]
    %v115 = vld [vmem:[#allocation7 + $0xa4] sm:$0xf]
    %v116 = vld [vmem:[#allocation7 + $0xa8] sm:$0xff]
    %v117 = vld [vmem:[#allocation7 + $0xb0] sm:$0xf]
    %v118 = vld [vmem:[#allocation7 + $0xb4] sm:$0xff]
    %v119 = vld [vmem:[#allocation7 + $0xbc] sm:$0xf]
    %v120 = vld [vmem:[%s3] sm:$0x7]
    %v122 = vlaneseq
    %v123 = vshrl.u32 %v122, 7
    %v124 = vsub.s32 0, %v123
    %v125 = vrot.slane %v120, %v124
    %v126 = vlaneseq
    %v127 = vshrl.u32 %v126, 7
    %v128 = vsub.s32 1, %v127
    %v129 = vrot.slane %v120, %v128
    %v130 = vlaneseq
    %v131 = vshrl.u32 %v130, 7
    %v132 = vsub.s32 2, %v131
    %v133 = vrot.slane %v120, %v132
    %v169 = vunpack.c.l.b16 %v88
    %v170 = vunpack.c.h.b16 %v88
    %v171 = vunpack.c.l.b16 %v89
    %v172 = vunpack.c.l.b16 %v90
    %v173 = vunpack.c.h.b16 %v90
    %v174 = vunpack.c.l.b16 %v91
    %v175 = vunpack.c.l.b16 %v92
    %v176 = vunpack.c.h.b16 %v92
    %v177 = vunpack.c.l.b16 %v93
    %v178 = vunpack.c.l.b16 %v94
    %v179 = vunpack.c.h.b16 %v94
    %v180 = vunpack.c.l.b16 %v95
    %v181 = vunpack.c.l.b16 %v96
    %v182 = vunpack.c.h.b16 %v96
    %v183 = vunpack.c.l.b16 %v97
    %v184 = vunpack.c.l.b16 %v98
    %v185 = vunpack.c.h.b16 %v98
    %v186 = vunpack.c.l.b16 %v99
    %v187 = vunpack.c.l.b16 %v100
    %v188 = vunpack.c.h.b16 %v100
    %v189 = vunpack.c.l.b16 %v101
    %v190 = vunpack.c.l.b16 %v102
    %v191 = vunpack.c.h.b16 %v102
    %v192 = vunpack.c.l.b16 %v103
    %v193 = vunpack.c.l.b16 %v104
    %v194 = vunpack.c.h.b16 %v104
    %v195 = vunpack.c.l.b16 %v105
    %v196 = vunpack.c.l.b16 %v106
    %v197 = vunpack.c.h.b16 %v106
    %v198 = vunpack.c.l.b16 %v107
    %v199 = vunpack.c.l.b16 %v108
    %v200 = vunpack.c.h.b16 %v108
    %v201 = vunpack.c.l.b16 %v109
    %v202 = vunpack.c.l.b16 %v110
    %v203 = vunpack.c.h.b16 %v110
    %v204 = vunpack.c.l.b16 %v111
    %v205 = vunpack.c.l.b16 %v112
    %v206 = vunpack.c.h.b16 %v112
    %v207 = vunpack.c.l.b16 %v113
    %v208 = vunpack.c.l.b16 %v114
    %v209 = vunpack.c.h.b16 %v114
    %v210 = vunpack.c.l.b16 %v115
    %v211 = vunpack.c.l.b16 %v116
    %v212 = vunpack.c.h.b16 %v116
    %v213 = vunpack.c.l.b16 %v117
    %v214 = vunpack.c.l.b16 %v118
    %v215 = vunpack.c.h.b16 %v118
    %v216 = vunpack.c.l.b16 %v119
    %v217 = vpack.c.b16 %v172, %v169
    %v218 = vpack.c.b16 %v173, %v170
    %v219 = vpack.c.b16 %v174, %v171
    %v220 = vpack.c.b16 %v178, %v175
    %v221 = vpack.c.b16 %v179, %v176
    %v222 = vpack.c.b16 %v180, %v177
    %v223 = vpack.c.b16 %v184, %v181
    %v224 = vpack.c.b16 %v185, %v182
    %v225 = vpack.c.b16 %v186, %v183
    %v226 = vpack.c.b16 %v190, %v187
    %v227 = vpack.c.b16 %v191, %v188
    %v228 = vpack.c.b16 %v192, %v189
    %v229 = vpack.c.b16 %v196, %v193
    %v230 = vpack.c.b16 %v197, %v194
    %v231 = vpack.c.b16 %v198, %v195
    %v232 = vpack.c.b16 %v202, %v199
    %v233 = vpack.c.b16 %v203, %v200
    %v234 = vpack.c.b16 %v204, %v201
    %v235 = vpack.c.b16 %v208, %v205
    %v236 = vpack.c.b16 %v209, %v206
    %v237 = vpack.c.b16 %v210, %v207
    %v238 = vpack.c.b16 %v214, %v211
    %v239 = vpack.c.b16 %v215, %v212
    %v240 = vpack.c.b16 %v216, %v213
    %265 = vmatprep.subr.bf16.mxu0 %v218
    %266 = vmatpush1.bf16.msra.mxu0 %v217
    %267 = vmatprep.subr.bf16.mxu0 %v221
    %268 = vmatpush1.bf16.msra.mxu0 %v220
    %269 = vmatprep.subr.bf16.mxu0 %v224
    %270 = vmatpush1.bf16.msra.mxu0 %v223
    %271 = vmatprep.subr.bf16.mxu0 %v227
    %272 = vmatpush1.bf16.msra.mxu0 %v226
    %273 = vmatprep.subr.bf16.mxu0 %v230
    %274 = vmatpush1.bf16.msra.mxu0 %v229
    %275 = vmatprep.subr.bf16.mxu0 %v233
    %276 = vmatpush1.bf16.msra.mxu0 %v232
    %277 = vmatprep.subr.bf16.mxu0 %v236
    %278 = vmatpush1.bf16.msra.mxu0 %v235
    %279 = vmatprep.subr.bf16.mxu0 %v239
    %280 = vmatpush1.bf16.msra.mxu0 %v238
    %281 = vmatprep.subr.bf16.mxu0 0
    %282 = vmatpush1.bf16.msra.mxu0 0
    %283 = vmatprep.subr.bf16.mxu0 0
    %284 = vmatpush1.bf16.msra.mxu0 0
    %285 = vmatprep.subr.bf16.mxu0 0
    %286 = vmatpush1.bf16.msra.mxu0 0
    %287 = vmatprep.subr.bf16.mxu0 0
    %288 = vmatpush1.bf16.msra.mxu0 0
    %289 = vmatprep.subr.bf16.mxu0 0
    %290 = vmatpush1.bf16.msra.mxu0 0
    %291 = vmatprep.subr.bf16.mxu0 0
    %292 = vmatpush1.bf16.msra.mxu0 0
    %293 = vmatprep.subr.bf16.mxu0 0
    %294 = vmatpush1.bf16.msra.mxu0 0
    %295 = vmatprep.subr.bf16.mxu0 0
    %296 = vmatpush1.bf16.msra.mxu0 0
    %297 = vmatprep.mubr.bf16.mxu0 0
    %298 = vmatmul.mubr.bf16.gmra.mrb[0].mxu0 %v87
    %v299 = vpop.f32.mrb[0].mxu0
    %v300 = vadd.f32 %v125, %v299
    %v301 = vpop.f32.mrb[0].mxu0
    %v302 = vadd.f32 %v129, %v301
    %v303 = vpop.f32.mrb[0].mxu0
    %v304 = vpop.f32.mrb[0].mxu0
    %305 = vdwg.mxu0
    %306 = vmatprep.subr.bf16.mxu0 0
    %307 = vmatpush1.bf16.msra.mxu0 %v219
    %308 = vmatprep.subr.bf16.mxu0 0
    %309 = vmatpush1.bf16.msra.mxu0 %v222
    %310 = vmatprep.subr.bf16.mxu0 0
    %311 = vmatpush1.bf16.msra.mxu0 %v225
    %312 = vmatprep.subr.bf16.mxu0 0
    %313 = vmatpush1.bf16.msra.mxu0 %v228
    %314 = vmatprep.subr.bf16.mxu0 0
    %315 = vmatpush1.bf16.msra.mxu0 %v231
    %316 = vmatprep.subr.bf16.mxu0 0
    %317 = vmatpush1.bf16.msra.mxu0 %v234
    %318 = vmatprep.subr.bf16.mxu0 0
    %319 = vmatpush1.bf16.msra.mxu0 %v237
    %320 = vmatprep.subr.bf16.mxu0 0
    %321 = vmatpush1.bf16.msra.mxu0 %v240
    %322 = vmatprep.subr.bf16.mxu0 0
    %323 = vmatpush1.bf16.msra.mxu0 0
    %324 = vmatprep.subr.bf16.mxu0 0
    %325 = vmatpush1.bf16.msra.mxu0 0
    %326 = vmatprep.subr.bf16.mxu0 0
    %327 = vmatpush1.bf16.msra.mxu0 0
    %328 = vmatprep.subr.bf16.mxu0 0
    %329 = vmatpush1.bf16.msra.mxu0 0
    %330 = vmatprep.subr.bf16.mxu0 0
    %331 = vmatpush1.bf16.msra.mxu0 0
    %332 = vmatprep.subr.bf16.mxu0 0
    %333 = vmatpush1.bf16.msra.mxu0 0
    %334 = vmatprep.subr.bf16.mxu0 0
    %335 = vmatpush1.bf16.msra.mxu0 0
    %336 = vmatprep.subr.bf16.mxu0 0
    %337 = vmatpush1.bf16.msra.mxu0 0
    %338 = vmatprep.mubr.bf16.mxu0 0
    %339 = vmatmul.mubr.bf16.gmra.mrb[0].mxu0 %v87
    %v340 = vpop.f32.mrb[0].mxu0
    %v341 = vadd.f32 %v133, %v340
    %v342 = vpop.f32.mrb[0].mxu0
    %v343 = vpop.f32.mrb[0].mxu0
    %v344 = vpop.f32.mrb[0].mxu0
    %345 = vdwg.mxu0
    %346 = vst [vmem:[#allocation2] sm:$0xff] %v300
    %347 = vst [vmem:[#allocation2 + $0x8] sm:$0xff] %v302
    %348 = vst [vmem:[#allocation2 + $0x10] sm:$0xff] %v341
    %v349 = vld [vmem:[%s7] sm:$0x1]
    %v350 = vld [vmem:[#allocation2] ss:$8 sm:$0x7]
    %v351 = vpack.c.bf16 %v349, %v349
    %v352 = vld [vmem:[#allocation9] sm:$0xff]
    %v353 = vld [vmem:[#allocation9 + $0x8] sm:$0xf]
    %v354 = vld [vmem:[#allocation9 + $0xc] sm:$0xff]
    %v355 = vld [vmem:[#allocation9 + $0x14] sm:$0xf]
    %v356 = vld [vmem:[#allocation9 + $0x18] sm:$0xff]
    %v357 = vld [vmem:[#allocation9 + $0x20] sm:$0xf]
    %v358 = vld [vmem:[#allocation9 + $0x24] sm:$0xff]
    %v359 = vld [vmem:[#allocation9 + $0x2c] sm:$0xf]
    %v360 = vld [vmem:[#allocation9 + $0x30] sm:$0xff]
    %v361 = vld [vmem:[#allocation9 + $0x38] sm:$0xf]
    %v362 = vld [vmem:[#allocation9 + $0x3c] sm:$0xff]
    %v363 = vld [vmem:[#allocation9 + $0x44] sm:$0xf]
    %v364 = vld [vmem:[#allocation9 + $0x48] sm:$0xff]
    %v365 = vld [vmem:[#allocation9 + $0x50] sm:$0xf]
    %v366 = vld [vmem:[#allocation9 + $0x54] sm:$0xff]
    %v367 = vld [vmem:[#allocation9 + $0x5c] sm:$0xf]
    %v368 = vld [vmem:[#allocation9 + $0x60] sm:$0xff]
    %v369 = vld [vmem:[#allocation9 + $0x68] sm:$0xf]
    %v370 = vld [vmem:[#allocation9 + $0x6c] sm:$0xff]
    %v371 = vld [vmem:[#allocation9 + $0x74] sm:$0xf]
    %v372 = vld [vmem:[#allocation9 + $0x78] sm:$0xff]
    %v373 = vld [vmem:[#allocation9 + $0x80] sm:$0xf]
    %v374 = vld [vmem:[#allocation9 + $0x84] sm:$0xff]
    %v375 = vld [vmem:[#allocation9 + $0x8c] sm:$0xf]
    %v376 = vld [vmem:[#allocation9 + $0x90] sm:$0xff]
    %v377 = vld [vmem:[#allocation9 + $0x98] sm:$0xf]
    %v378 = vld [vmem:[#allocation9 + $0x9c] sm:$0xff]
    %v379 = vld [vmem:[#allocation9 + $0xa4] sm:$0xf]
    %v380 = vld [vmem:[#allocation9 + $0xa8] sm:$0xff]
    %v381 = vld [vmem:[#allocation9 + $0xb0] sm:$0xf]
    %v382 = vld [vmem:[#allocation9 + $0xb4] sm:$0xff]
    %v383 = vld [vmem:[#allocation9 + $0xbc] sm:$0xf]
    %v384 = vld [vmem:[%s4] sm:$0x7]
    %v417 = vunpack.c.l.b16 %v352
    %v418 = vunpack.c.h.b16 %v352
    %v419 = vunpack.c.l.b16 %v353
    %v420 = vunpack.c.l.b16 %v354
    %v421 = vunpack.c.h.b16 %v354
    %v422 = vunpack.c.l.b16 %v355
    %v423 = vunpack.c.l.b16 %v356
    %v424 = vunpack.c.h.b16 %v356
    %v425 = vunpack.c.l.b16 %v357
    %v426 = vunpack.c.l.b16 %v358
    %v427 = vunpack.c.h.b16 %v358
    %v428 = vunpack.c.l.b16 %v359
    %v429 = vunpack.c.l.b16 %v360
    %v430 = vunpack.c.h.b16 %v360
    %v431 = vunpack.c.l.b16 %v361
    %v432 = vunpack.c.l.b16 %v362
    %v433 = vunpack.c.h.b16 %v362
    %v434 = vunpack.c.l.b16 %v363
    %v435 = vunpack.c.l.b16 %v364
    %v436 = vunpack.c.h.b16 %v364
    %v437 = vunpack.c.l.b16 %v365
    %v438 = vunpack.c.l.b16 %v366
    %v439 = vunpack.c.h.b16 %v366
    %v440 = vunpack.c.l.b16 %v367
    %v441 = vunpack.c.l.b16 %v368
    %v442 = vunpack.c.h.b16 %v368
    %v443 = vunpack.c.l.b16 %v369
    %v444 = vunpack.c.l.b16 %v370
    %v445 = vunpack.c.h.b16 %v370
    %v446 = vunpack.c.l.b16 %v371
    %v447 = vunpack.c.l.b16 %v372
    %v448 = vunpack.c.h.b16 %v372
    %v449 = vunpack.c.l.b16 %v373
    %v450 = vunpack.c.l.b16 %v374
    %v451 = vunpack.c.h.b16 %v374
    %v452 = vunpack.c.l.b16 %v375
    %v453 = vunpack.c.l.b16 %v376
    %v454 = vunpack.c.h.b16 %v376
    %v455 = vunpack.c.l.b16 %v377
    %v456 = vunpack.c.l.b16 %v378
    %v457 = vunpack.c.h.b16 %v378
    %v458 = vunpack.c.l.b16 %v379
    %v459 = vunpack.c.l.b16 %v380
    %v460 = vunpack.c.h.b16 %v380
    %v461 = vunpack.c.l.b16 %v381
    %v462 = vunpack.c.l.b16 %v382
    %v463 = vunpack.c.h.b16 %v382
    %v464 = vunpack.c.l.b16 %v383
    %v465 = vpack.c.b16 %v420, %v417
    %v466 = vpack.c.b16 %v421, %v418
    %v467 = vpack.c.b16 %v422, %v419
    %v468 = vpack.c.b16 %v426, %v423
    %v469 = vpack.c.b16 %v427, %v424
    %v470 = vpack.c.b16 %v428, %v425
    %v471 = vpack.c.b16 %v432, %v429
    %v472 = vpack.c.b16 %v433, %v430
    %v473 = vpack.c.b16 %v434, %v431
    %v474 = vpack.c.b16 %v438, %v435
    %v475 = vpack.c.b16 %v439, %v436
    %v476 = vpack.c.b16 %v440, %v437
    %v477 = vpack.c.b16 %v444, %v441
    %v478 = vpack.c.b16 %v445, %v442
    %v479 = vpack.c.b16 %v446, %v443
    %v480 = vpack.c.b16 %v450, %v447
    %v481 = vpack.c.b16 %v451, %v448
    %v482 = vpack.c.b16 %v452, %v449
    %v483 = vpack.c.b16 %v456, %v453
    %v484 = vpack.c.b16 %v457, %v454
    %v485 = vpack.c.b16 %v458, %v455
    %v486 = vpack.c.b16 %v462, %v459
    %v487 = vpack.c.b16 %v463, %v460
    %v488 = vpack.c.b16 %v464, %v461
    %v514 = vlaneseq
    %v515 = vshrl.u32 %v514, 7
    %v516 = vsub.s32 0, %v515
    %v517 = vrot.slane %v384, %v516
    %v518 = vlaneseq
    %v519 = vshrl.u32 %v518, 7
    %v520 = vsub.s32 1, %v519
    %v521 = vrot.slane %v384, %v520
    %v522 = vlaneseq
    %v523 = vshrl.u32 %v522, 7
    %v524 = vsub.s32 2, %v523
    %v525 = vrot.slane %v384, %v524
    %529 = vmatprep.subr.bf16.mxu0 %v466
    %530 = vmatpush1.bf16.msra.mxu0 %v465
    %531 = vmatprep.subr.bf16.mxu0 %v469
    %532 = vmatpush1.bf16.msra.mxu0 %v468
    %533 = vmatprep.subr.bf16.mxu0 %v472
    %534 = vmatpush1.bf16.msra.mxu0 %v471
    %535 = vmatprep.subr.bf16.mxu0 %v475
    %536 = vmatpush1.bf16.msra.mxu0 %v474
    %537 = vmatprep.subr.bf16.mxu0 %v478
    %538 = vmatpush1.bf16.msra.mxu0 %v477
    %539 = vmatprep.subr.bf16.mxu0 %v481
    %540 = vmatpush1.bf16.msra.mxu0 %v480
    %541 = vmatprep.subr.bf16.mxu0 %v484
    %542 = vmatpush1.bf16.msra.mxu0 %v483
    %543 = vmatprep.subr.bf16.mxu0 %v487
    %544 = vmatpush1.bf16.msra.mxu0 %v486
    %545 = vmatprep.subr.bf16.mxu0 0
    %546 = vmatpush1.bf16.msra.mxu0 0
    %547 = vmatprep.subr.bf16.mxu0 0
    %548 = vmatpush1.bf16.msra.mxu0 0
    %549 = vmatprep.subr.bf16.mxu0 0
    %550 = vmatpush1.bf16.msra.mxu0 0
    %551 = vmatprep.subr.bf16.mxu0 0
    %552 = vmatpush1.bf16.msra.mxu0 0
    %553 = vmatprep.subr.bf16.mxu0 0
    %554 = vmatpush1.bf16.msra.mxu0 0
    %555 = vmatprep.subr.bf16.mxu0 0
    %556 = vmatpush1.bf16.msra.mxu0 0
    %557 = vmatprep.subr.bf16.mxu0 0
    %558 = vmatpush1.bf16.msra.mxu0 0
    %559 = vmatprep.subr.bf16.mxu0 0
    %560 = vmatpush1.bf16.msra.mxu0 0
    %561 = vmatprep.mubr.bf16.mxu0 0
    %562 = vmatmul.mubr.bf16.gmra.mrb[0].mxu0 %v351
    %v563 = vpop.f32.mrb[0].mxu0
    %v564 = vadd.f32 %v517, %v563
    %v565 = vpop.f32.mrb[0].mxu0
    %v566 = vadd.f32 %v521, %v565
    %v567 = vpop.f32.mrb[0].mxu0
    %v568 = vpop.f32.mrb[0].mxu0
    %569 = vdwg.mxu0
    %570 = vmatprep.subr.bf16.mxu0 0
    %571 = vmatpush1.bf16.msra.mxu0 %v467
    %572 = vmatprep.subr.bf16.mxu0 0
    %573 = vmatpush1.bf16.msra.mxu0 %v470
    %574 = vmatprep.subr.bf16.mxu0 0
    %575 = vmatpush1.bf16.msra.mxu0 %v473
    %576 = vmatprep.subr.bf16.mxu0 0
    %577 = vmatpush1.bf16.msra.mxu0 %v476
    %578 = vmatprep.subr.bf16.mxu0 0
    %579 = vmatpush1.bf16.msra.mxu0 %v479
    %580 = vmatprep.subr.bf16.mxu0 0
    %581 = vmatpush1.bf16.msra.mxu0 %v482
    %582 = vmatprep.subr.bf16.mxu0 0
    %583 = vmatpush1.bf16.msra.mxu0 %v485
    %584 = vmatprep.subr.bf16.mxu0 0
    %585 = vmatpush1.bf16.msra.mxu0 %v488
    %586 = vmatprep.subr.bf16.mxu0 0
    %587 = vmatpush1.bf16.msra.mxu0 0
    %588 = vmatprep.subr.bf16.mxu0 0
    %589 = vmatpush1.bf16.msra.mxu0 0
    %590 = vmatprep.subr.bf16.mxu0 0
    %591 = vmatpush1.bf16.msra.mxu0 0
    %592 = vmatprep.subr.bf16.mxu0 0
    %593 = vmatpush1.bf16.msra.mxu0 0
    %594 = vmatprep.subr.bf16.mxu0 0
    %595 = vmatpush1.bf16.msra.mxu0 0
    %596 = vmatprep.subr.bf16.mxu0 0
    %597 = vmatpush1.bf16.msra.mxu0 0
    %598 = vmatprep.subr.bf16.mxu0 0
    %599 = vmatpush1.bf16.msra.mxu0 0
    %600 = vmatprep.subr.bf16.mxu0 0
    %601 = vmatpush1.bf16.msra.mxu0 0
    %602 = vmatprep.mubr.bf16.mxu0 0
    %603 = vmatmul.mubr.bf16.gmra.mrb[0].mxu0 %v351
    %v604 = vpop.f32.mrb[0].mxu0
    %v605 = vadd.f32 %v525, %v604
    %v606 = vpop.f32.mrb[0].mxu0
    %v607 = vpop.f32.mrb[0].mxu0
    %v608 = vpop.f32.mrb[0].mxu0
    %609 = vdwg.mxu0
    %v610 = vadd.f32 %v350, %v564
    %v611 = vxor.u32 %v610, 2147483648
    %v612 = vmul.f32 %v611, 1.442695
    %v613 = vpow.pop %v612
    %v614 = vadd.f32 %v613, 1.0
    %v615 = vrcp.pop %v614
    %v616 = vmul.f32 1.0, %v615
    %v618 = vrot.slane %v350, 1
    %v620 = vadd.f32 %v618, %v566
    %v621 = vxor.u32 %v620, 2147483648
    %v622 = vmul.f32 %v621, 1.442695
    %v623 = vpow.pop %v622
    %v624 = vadd.f32 %v623, 1.0
    %v625 = vrcp.pop %v624
    %v626 = vmul.f32 1.0, %v625
    %v627 = vmul.f32 %v616, %v605
    %v628 = vrot.slane %v350, 2
    %v630 = vadd.f32 %v628, %v627
    %v631 = vtanh.pop %v630
    %v632 = vsub.f32 1.0, %v626
    %v633 = vmul.f32 %v632, %v631
    %v634 = vmul.f32 %v626, %v349
    %v635 = vadd.f32 %v633, %v634
    %636 = vst [vmem:[#allocation3] sm:$0x1] %v635
    %s637 = scalar_lea.vmem [#allocation2], 1
    %v638 = vld [vmem:[%s637] ss:$8 sm:$0x7]
    %v639 = vpack.c.bf16 %v635, %v635
    %v640 = vld [vmem:[#allocation9] sm:$0xff]
    %v641 = vld [vmem:[#allocation9 + $0x8] sm:$0xf]
    %v642 = vld [vmem:[#allocation9 + $0xc] sm:$0xff]
    %v643 = vld [vmem:[#allocation9 + $0x14] sm:$0xf]
    %v644 = vld [vmem:[#allocation9 + $0x18] sm:$0xff]
    %v645 = vld [vmem:[#allocation9 + $0x20] sm:$0xf]
    %v646 = vld [vmem:[#allocation9 + $0x24] sm:$0xff]
    %v647 = vld [vmem:[#allocation9 + $0x2c] sm:$0xf]
    %v648 = vld [vmem:[#allocation9 + $0x30] sm:$0xff]
    %v649 = vld [vmem:[#allocation9 + $0x38] sm:$0xf]
    %v650 = vld [vmem:[#allocation9 + $0x3c] sm:$0xff]
    %v651 = vld [vmem:[#allocation9 + $0x44] sm:$0xf]
    %v652 = vld [vmem:[#allocation9 + $0x48] sm:$0xff]
    %v653 = vld [vmem:[#allocation9 + $0x50] sm:$0xf]
    %v654 = vld [vmem:[#allocation9 + $0x54] sm:$0xff]
    %v655 = vld [vmem:[#allocation9 + $0x5c] sm:$0xf]
    %v656 = vld [vmem:[#allocation9 + $0x60] sm:$0xff]
    %v657 = vld [vmem:[#allocation9 + $0x68] sm:$0xf]
    %v658 = vld [vmem:[#allocation9 + $0x6c] sm:$0xff]
    %v659 = vld [vmem:[#allocation9 + $0x74] sm:$0xf]
    %v660 = vld [vmem:[#allocation9 + $0x78] sm:$0xff]
    %v661 = vld [vmem:[#allocation9 + $0x80] sm:$0xf]
    %v662 = vld [vmem:[#allocation9 + $0x84] sm:$0xff]
    %v663 = vld [vmem:[#allocation9 + $0x8c] sm:$0xf]
    %v664 = vld [vmem:[#allocation9 + $0x90] sm:$0xff]
    %v665 = vld [vmem:[#allocation9 + $0x98] sm:$0xf]
    %v666 = vld [vmem:[#allocation9 + $0x9c] sm:$0xff]
    %v667 = vld [vmem:[#allocation9 + $0xa4] sm:$0xf]
    %v668 = vld [vmem:[#allocation9 + $0xa8] sm:$0xff]
    %v669 = vld [vmem:[#allocation9 + $0xb0] sm:$0xf]
    %v670 = vld [vmem:[#allocation9 + $0xb4] sm:$0xff]
    %v671 = vld [vmem:[#allocation9 + $0xbc] sm:$0xf]
    %v672 = vld [vmem:[%s4] sm:$0x7]
    %v705 = vunpack.c.l.b16 %v640
    %v706 = vunpack.c.h.b16 %v640
    %v707 = vunpack.c.l.b16 %v641
    %v708 = vunpack.c.l.b16 %v642
    %v709 = vunpack.c.h.b16 %v642
    %v710 = vunpack.c.l.b16 %v643
    %v711 = vunpack.c.l.b16 %v644
    %v712 = vunpack.c.h.b16 %v644
    %v713 = vunpack.c.l.b16 %v645
    %v714 = vunpack.c.l.b16 %v646
    %v715 = vunpack.c.h.b16 %v646
    %v716 = vunpack.c.l.b16 %v647
    %v717 = vunpack.c.l.b16 %v648
    %v718 = vunpack.c.h.b16 %v648
    %v719 = vunpack.c.l.b16 %v649
    %v720 = vunpack.c.l.b16 %v650
    %v721 = vunpack.c.h.b16 %v650
    %v722 = vunpack.c.l.b16 %v651
    %v723 = vunpack.c.l.b16 %v652
    %v724 = vunpack.c.h.b16 %v652
    %v725 = vunpack.c.l.b16 %v653
    %v726 = vunpack.c.l.b16 %v654
    %v727 = vunpack.c.h.b16 %v654
    %v728 = vunpack.c.l.b16 %v655
    %v729 = vunpack.c.l.b16 %v656
    %v730 = vunpack.c.h.b16 %v656
    %v731 = vunpack.c.l.b16 %v657
    %v732 = vunpack.c.l.b16 %v658
    %v733 = vunpack.c.h.b16 %v658
    %v734 = vunpack.c.l.b16 %v659
    %v735 = vunpack.c.l.b16 %v660
    %v736 = vunpack.c.h.b16 %v660
    %v737 = vunpack.c.l.b16 %v661
    %v738 = vunpack.c.l.b16 %v662
    %v739 = vunpack.c.h.b16 %v662
    %v740 = vunpack.c.l.b16 %v663
    %v741 = vunpack.c.l.b16 %v664
    %v742 = vunpack.c.h.b16 %v664
    %v743 = vunpack.c.l.b16 %v665
    %v744 = vunpack.c.l.b16 %v666
    %v745 = vunpack.c.h.b16 %v666
    %v746 = vunpack.c.l.b16 %v667
    %v747 = vunpack.c.l.b16 %v668
    %v748 = vunpack.c.h.b16 %v668
    %v749 = vunpack.c.l.b16 %v669
    %v750 = vunpack.c.l.b16 %v670
    %v751 = vunpack.c.h.b16 %v670
    %v752 = vunpack.c.l.b16 %v671
    %v753 = vpack.c.b16 %v708, %v705
    %v754 = vpack.c.b16 %v709, %v706
    %v755 = vpack.c.b16 %v710, %v707
    %v756 = vpack.c.b16 %v714, %v711
    %v757 = vpack.c.b16 %v715, %v712
    %v758 = vpack.c.b16 %v716, %v713
    %v759 = vpack.c.b16 %v720, %v717
    %v760 = vpack.c.b16 %v721, %v718
    %v761 = vpack.c.b16 %v722, %v719
    %v762 = vpack.c.b16 %v726, %v723
    %v763 = vpack.c.b16 %v727, %v724
    %v764 = vpack.c.b16 %v728, %v725
    %v765 = vpack.c.b16 %v732, %v729
    %v766 = vpack.c.b16 %v733, %v730
    %v767 = vpack.c.b16 %v734, %v731
    %v768 = vpack.c.b16 %v738, %v735
    %v769 = vpack.c.b16 %v739, %v736
    %v770 = vpack.c.b16 %v740, %v737
    %v771 = vpack.c.b16 %v744, %v741
    %v772 = vpack.c.b16 %v745, %v742
    %v773 = vpack.c.b16 %v746, %v743
    %v774 = vpack.c.b16 %v750, %v747
    %v775 = vpack.c.b16 %v751, %v748
    %v776 = vpack.c.b16 %v752, %v749
    %v802 = vlaneseq
    %v803 = vshrl.u32 %v802, 7
    %v804 = vsub.s32 0, %v803
    %v805 = vrot.slane %v672, %v804
    %v806 = vlaneseq
    %v807 = vshrl.u32 %v806, 7
    %v808 = vsub.s32 1, %v807
    %v809 = vrot.slane %v672, %v808
    %v810 = vlaneseq
    %v811 = vshrl.u32 %v810, 7
    %v812 = vsub.s32 2, %v811
    %v813 = vrot.slane %v672, %v812
    %817 = vmatprep.subr.bf16.mxu0 %v754
    %818 = vmatpush1.bf16.msra.mxu0 %v753
    %819 = vmatprep.subr.bf16.mxu0 %v757
    %820 = vmatpush1.bf16.msra.mxu0 %v756
    %821 = vmatprep.subr.bf16.mxu0 %v760
    %822 = vmatpush1.bf16.msra.mxu0 %v759
    %823 = vmatprep.subr.bf16.mxu0 %v763
    %824 = vmatpush1.bf16.msra.mxu0 %v762
    %825 = vmatprep.subr.bf16.mxu0 %v766
    %826 = vmatpush1.bf16.msra.mxu0 %v765
    %827 = vmatprep.subr.bf16.mxu0 %v769
    %828 = vmatpush1.bf16.msra.mxu0 %v768
    %829 = vmatprep.subr.bf16.mxu0 %v772
    %830 = vmatpush1.bf16.msra.mxu0 %v771
    %831 = vmatprep.subr.bf16.mxu0 %v775
    %832 = vmatpush1.bf16.msra.mxu0 %v774
    %833 = vmatprep.subr.bf16.mxu0 0
    %834 = vmatpush1.bf16.msra.mxu0 0
    %835 = vmatprep.subr.bf16.mxu0 0
    %836 = vmatpush1.bf16.msra.mxu0 0
    %837 = vmatprep.subr.bf16.mxu0 0
    %838 = vmatpush1.bf16.msra.mxu0 0
    %839 = vmatprep.subr.bf16.mxu0 0
    %840 = vmatpush1.bf16.msra.mxu0 0
    %841 = vmatprep.subr.bf16.mxu0 0
    %842 = vmatpush1.bf16.msra.mxu0 0
    %843 = vmatprep.subr.bf16.mxu0 0
    %844 = vmatpush1.bf16.msra.mxu0 0
    %845 = vmatprep.subr.bf16.mxu0 0
    %846 = vmatpush1.bf16.msra.mxu0 0
    %847 = vmatprep.subr.bf16.mxu0 0
    %848 = vmatpush1.bf16.msra.mxu0 0
    %849 = vmatprep.mubr.bf16.mxu0 0
    %850 = vmatmul.mubr.bf16.gmra.mrb[0].mxu0 %v639
    %v851 = vpop.f32.mrb[0].mxu0
    %v852 = vadd.f32 %v805, %v851
    %v853 = vpop.f32.mrb[0].mxu0
    %v854 = vadd.f32 %v809, %v853
    %v855 = vpop.f32.mrb[0].mxu0
    %v856 = vpop.f32.mrb[0].mxu0
    %857 = vdwg.mxu0
    %858 = vmatprep.subr.bf16.mxu0 0
    %859 = vmatpush1.bf16.msra.mxu0 %v755
    %860 = vmatprep.subr.bf16.mxu0 0
    %861 = vmatpush1.bf16.msra.mxu0 %v758
    %862 = vmatprep.subr.bf16.mxu0 0
    %863 = vmatpush1.bf16.msra.mxu0 %v761
    %864 = vmatprep.subr.bf16.mxu0 0
    %865 = vmatpush1.bf16.msra.mxu0 %v764
    %866 = vmatprep.subr.bf16.mxu0 0
    %867 = vmatpush1.bf16.msra.mxu0 %v767
    %868 = vmatprep.subr.bf16.mxu0 0
    %869 = vmatpush1.bf16.msra.mxu0 %v770
    %870 = vmatprep.subr.bf16.mxu0 0
    %871 = vmatpush1.bf16.msra.mxu0 %v773
    %872 = vmatprep.subr.bf16.mxu0 0
    %873 = vmatpush1.bf16.msra.mxu0 %v776
    %874 = vmatprep.subr.bf16.mxu0 0
    %875 = vmatpush1.bf16.msra.mxu0 0
    %876 = vmatprep.subr.bf16.mxu0 0
    %877 = vmatpush1.bf16.msra.mxu0 0
    %878 = vmatprep.subr.bf16.mxu0 0
    %879 = vmatpush1.bf16.msra.mxu0 0
    %880 = vmatprep.subr.bf16.mxu0 0
    %881 = vmatpush1.bf16.msra.mxu0 0
    %882 = vmatprep.subr.bf16.mxu0 0
    %883 = vmatpush1.bf16.msra.mxu0 0
    %884 = vmatprep.subr.bf16.mxu0 0
    %885 = vmatpush1.bf16.msra.mxu0 0
    %886 = vmatprep.subr.bf16.mxu0 0
    %887 = vmatpush1.bf16.msra.mxu0 0
    %888 = vmatprep.subr.bf16.mxu0 0
    %889 = vmatpush1.bf16.msra.mxu0 0
    %890 = vmatprep.mubr.bf16.mxu0 0
    %891 = vmatmul.mubr.bf16.gmra.mrb[0].mxu0 %v639
    %v892 = vpop.f32.mrb[0].mxu0
    %v893 = vadd.f32 %v813, %v892
    %v894 = vpop.f32.mrb[0].mxu0
    %v895 = vpop.f32.mrb[0].mxu0
    %v896 = vpop.f32.mrb[0].mxu0
    %897 = vdwg.mxu0
    %v898 = vadd.f32 %v638, %v852
    %v899 = vxor.u32 %v898, 2147483648
    %v900 = vmul.f32 %v899, 1.442695
    %v901 = vpow.pop %v900
    %v902 = vadd.f32 %v901, 1.0
    %v903 = vrcp.pop %v902
    %v904 = vmul.f32 1.0, %v903
    %v906 = vrot.slane %v638, 1
    %v908 = vadd.f32 %v906, %v854
    %v909 = vxor.u32 %v908, 2147483648
    %v910 = vmul.f32 %v909, 1.442695
    %v911 = vpow.pop %v910
    %v912 = vadd.f32 %v911, 1.0
    %v913 = vrcp.pop %v912
    %v914 = vmul.f32 1.0, %v913
    %v915 = vmul.f32 %v904, %v893
    %v916 = vrot.slane %v638, 2
    %v918 = vadd.f32 %v916, %v915
    %v919 = vtanh.pop %v918
    %v920 = vsub.f32 1.0, %v914
    %v921 = vmul.f32 %v920, %v919
    %v922 = vmul.f32 %v914, %v635
    %v923 = vadd.f32 %v921, %v922
    %924 = vst [vmem:[#allocation3 + $0x1] sm:$0x1] %v923
    %s925 = scalar_lea.vmem [#allocation2], 2
    %v926 = vld [vmem:[%s925] ss:$8 sm:$0x7]
    %v927 = vpack.c.bf16 %v923, %v923
    %v928 = vld [vmem:[#allocation9] sm:$0xff]
    %v929 = vld [vmem:[#allocation9 + $0x8] sm:$0xf]
    %v930 = vld [vmem:[#allocation9 + $0xc] sm:$0xff]
    %v931 = vld [vmem:[#allocation9 + $0x14] sm:$0xf]
    %v932 = vld [vmem:[#allocation9 + $0x18] sm:$0xff]
    %v933 = vld [vmem:[#allocation9 + $0x20] sm:$0xf]
    %v934 = vld [vmem:[#allocation9 + $0x24] sm:$0xff]
    %v935 = vld [vmem:[#allocation9 + $0x2c] sm:$0xf]
    %v936 = vld [vmem:[#allocation9 + $0x30] sm:$0xff]
    %v937 = vld [vmem:[#allocation9 + $0x38] sm:$0xf]
    %v938 = vld [vmem:[#allocation9 + $0x3c] sm:$0xff]
    %v939 = vld [vmem:[#allocation9 + $0x44] sm:$0xf]
    %v940 = vld [vmem:[#allocation9 + $0x48] sm:$0xff]
    %v941 = vld [vmem:[#allocation9 + $0x50] sm:$0xf]
    %v942 = vld [vmem:[#allocation9 + $0x54] sm:$0xff]
    %v943 = vld [vmem:[#allocation9 + $0x5c] sm:$0xf]
    %v944 = vld [vmem:[#allocation9 + $0x60] sm:$0xff]
    %v945 = vld [vmem:[#allocation9 + $0x68] sm:$0xf]
    %v946 = vld [vmem:[#allocation9 + $0x6c] sm:$0xff]
    %v947 = vld [vmem:[#allocation9 + $0x74] sm:$0xf]
    %v948 = vld [vmem:[#allocation9 + $0x78] sm:$0xff]
    %v949 = vld [vmem:[#allocation9 + $0x80] sm:$0xf]
    %v950 = vld [vmem:[#allocation9 + $0x84] sm:$0xff]
    %v951 = vld [vmem:[#allocation9 + $0x8c] sm:$0xf]
    %v952 = vld [vmem:[#allocation9 + $0x90] sm:$0xff]
    %v953 = vld [vmem:[#allocation9 + $0x98] sm:$0xf]
    %v954 = vld [vmem:[#allocation9 + $0x9c] sm:$0xff]
    %v955 = vld [vmem:[#allocation9 + $0xa4] sm:$0xf]
    %v956 = vld [vmem:[#allocation9 + $0xa8] sm:$0xff]
    %v957 = vld [vmem:[#allocation9 + $0xb0] sm:$0xf]
    %v958 = vld [vmem:[#allocation9 + $0xb4] sm:$0xff]
    %v959 = vld [vmem:[#allocation9 + $0xbc] sm:$0xf]
    %v960 = vld [vmem:[%s4] sm:$0x7]
    %v993 = vunpack.c.l.b16 %v928
    %v994 = vunpack.c.h.b16 %v928
    %v995 = vunpack.c.l.b16 %v929
    %v996 = vunpack.c.l.b16 %v930
    %v997 = vunpack.c.h.b16 %v930
    %v998 = vunpack.c.l.b16 %v931
    %v999 = vunpack.c.l.b16 %v932
    %v1000 = vunpack.c.h.b16 %v932
    %v1001 = vunpack.c.l.b16 %v933
    %v1002 = vunpack.c.l.b16 %v934
    %v1003 = vunpack.c.h.b16 %v934
    %v1004 = vunpack.c.l.b16 %v935
    %v1005 = vunpack.c.l.b16 %v936
    %v1006 = vunpack.c.h.b16 %v936
    %v1007 = vunpack.c.l.b16 %v937
    %v1008 = vunpack.c.l.b16 %v938
    %v1009 = vunpack.c.h.b16 %v938
    %v1010 = vunpack.c.l.b16 %v939
    %v1011 = vunpack.c.l.b16 %v940
    %v1012 = vunpack.c.h.b16 %v940
    %v1013 = vunpack.c.l.b16 %v941
    %v1014 = vunpack.c.l.b16 %v942
    %v1015 = vunpack.c.h.b16 %v942
    %v1016 = vunpack.c.l.b16 %v943
    %v1017 = vunpack.c.l.b16 %v944
    %v1018 = vunpack.c.h.b16 %v944
    %v1019 = vunpack.c.l.b16 %v945
    %v1020 = vunpack.c.l.b16 %v946
    %v1021 = vunpack.c.h.b16 %v946
    %v1022 = vunpack.c.l.b16 %v947
    %v1023 = vunpack.c.l.b16 %v948
    %v1024 = vunpack.c.h.b16 %v948
    %v1025 = vunpack.c.l.b16 %v949
    %v1026 = vunpack.c.l.b16 %v950
    %v1027 = vunpack.c.h.b16 %v950
    %v1028 = vunpack.c.l.b16 %v951
    %v1029 = vunpack.c.l.b16 %v952
    %v1030 = vunpack.c.h.b16 %v952
    %v1031 = vunpack.c.l.b16 %v953
    %v1032 = vunpack.c.l.b16 %v954
    %v1033 = vunpack.c.h.b16 %v954
    %v1034 = vunpack.c.l.b16 %v955
    %v1035 = vunpack.c.l.b16 %v956
    %v1036 = vunpack.c.h.b16 %v956
    %v1037 = vunpack.c.l.b16 %v957
    %v1038 = vunpack.c.l.b16 %v958
    %v1039 = vunpack.c.h.b16 %v958
    %v1040 = vunpack.c.l.b16 %v959
    %v1041 = vpack.c.b16 %v996, %v993
    %v1042 = vpack.c.b16 %v997, %v994
    %v1043 = vpack.c.b16 %v998, %v995
    %v1044 = vpack.c.b16 %v1002, %v999
    %v1045 = vpack.c.b16 %v1003, %v1000
    %v1046 = vpack.c.b16 %v1004, %v1001
    %v1047 = vpack.c.b16 %v1008, %v1005
    %v1048 = vpack.c.b16 %v1009, %v1006
    %v1049 = vpack.c.b16 %v1010, %v1007
    %v1050 = vpack.c.b16 %v1014, %v1011
    %v1051 = vpack.c.b16 %v1015, %v1012
    %v1052 = vpack.c.b16 %v1016, %v1013
    %v1053 = vpack.c.b16 %v1020, %v1017
    %v1054 = vpack.c.b16 %v1021, %v1018
    %v1055 = vpack.c.b16 %v1022, %v1019
    %v1056 = vpack.c.b16 %v1026, %v1023
    %v1057 = vpack.c.b16 %v1027, %v1024
    %v1058 = vpack.c.b16 %v1028, %v1025
    %v1059 = vpack.c.b16 %v1032, %v1029
    %v1060 = vpack.c.b16 %v1033, %v1030
    %v1061 = vpack.c.b16 %v1034, %v1031
    %v1062 = vpack.c.b16 %v1038, %v1035
    %v1063 = vpack.c.b16 %v1039, %v1036
    %v1064 = vpack.c.b16 %v1040, %v1037
    %v1090 = vlaneseq
    %v1091 = vshrl.u32 %v1090, 7
    %v1092 = vsub.s32 0, %v1091
    %v1093 = vrot.slane %v960, %v1092
    %v1094 = vlaneseq
    %v1095 = vshrl.u32 %v1094, 7
    %v1096 = vsub.s32 1, %v1095
    %v1097 = vrot.slane %v960, %v1096
    %v1098 = vlaneseq
    %v1099 = vshrl.u32 %v1098, 7
    %v1100 = vsub.s32 2, %v1099
    %v1101 = vrot.slane %v960, %v1100
    %1105 = vmatprep.subr.bf16.mxu0 %v1042
    %1106 = vmatpush1.bf16.msra.mxu0 %v1041
    %1107 = vmatprep.subr.bf16.mxu0 %v1045
    %1108 = vmatpush1.bf16.msra.mxu0 %v1044
    %1109 = vmatprep.subr.bf16.mxu0 %v1048
    %1110 = vmatpush1.bf16.msra.mxu0 %v1047
    %1111 = vmatprep.subr.bf16.mxu0 %v1051
    %1112 = vmatpush1.bf16.msra.mxu0 %v1050
    %1113 = vmatprep.subr.bf16.mxu0 %v1054
    %1114 = vmatpush1.bf16.msra.mxu0 %v1053
    %1115 = vmatprep.subr.bf16.mxu0 %v1057
    %1116 = vmatpush1.bf16.msra.mxu0 %v1056
    %1117 = vmatprep.subr.bf16.mxu0 %v1060
    %1118 = vmatpush1.bf16.msra.mxu0 %v1059
    %1119 = vmatprep.subr.bf16.mxu0 %v1063
    %1120 = vmatpush1.bf16.msra.mxu0 %v1062
    %1121 = vmatprep.subr.bf16.mxu0 0
    %1122 = vmatpush1.bf16.msra.mxu0 0
    %1123 = vmatprep.subr.bf16.mxu0 0
    %1124 = vmatpush1.bf16.msra.mxu0 0
    %1125 = vmatprep.subr.bf16.mxu0 0
    %1126 = vmatpush1.bf16.msra.mxu0 0
    %1127 = vmatprep.subr.bf16.mxu0 0
    %1128 = vmatpush1.bf16.msra.mxu0 0
    %1129 = vmatprep.subr.bf16.mxu0 0
    %1130 = vmatpush1.bf16.msra.mxu0 0
    %1131 = vmatprep.subr.bf16.mxu0 0
    %1132 = vmatpush1.bf16.msra.mxu0 0
    %1133 = vmatprep.subr.bf16.mxu0 0
    %1134 = vmatpush1.bf16.msra.mxu0 0
    %1135 = vmatprep.subr.bf16.mxu0 0
    %1136 = vmatpush1.bf16.msra.mxu0 0
    %1137 = vmatprep.mubr.bf16.mxu0 0
    %1138 = vmatmul.mubr.bf16.gmra.mrb[0].mxu0 %v927
    %v1139 = vpop.f32.mrb[0].mxu0
    %v1140 = vadd.f32 %v1093, %v1139
    %v1141 = vpop.f32.mrb[0].mxu0
    %v1142 = vadd.f32 %v1097, %v1141
    %v1143 = vpop.f32.mrb[0].mxu0
    %v1144 = vpop.f32.mrb[0].mxu0
    %1145 = vdwg.mxu0
    %1146 = vmatprep.subr.bf16.mxu0 0
    %1147 = vmatpush1.bf16.msra.mxu0 %v1043
    %1148 = vmatprep.subr.bf16.mxu0 0
    %1149 = vmatpush1.bf16.msra.mxu0 %v1046
    %1150 = vmatprep.subr.bf16.mxu0 0
    %1151 = vmatpush1.bf16.msra.mxu0 %v1049
    %1152 = vmatprep.subr.bf16.mxu0 0
    %1153 = vmatpush1.bf16.msra.mxu0 %v1052
    %1154 = vmatprep.subr.bf16.mxu0 0
    %1155 = vmatpush1.bf16.msra.mxu0 %v1055
    %1156 = vmatprep.subr.bf16.mxu0 0
    %1157 = vmatpush1.bf16.msra.mxu0 %v1058
    %1158 = vmatprep.subr.bf16.mxu0 0
    %1159 = vmatpush1.bf16.msra.mxu0 %v1061
    %1160 = vmatprep.subr.bf16.mxu0 0
    %1161 = vmatpush1.bf16.msra.mxu0 %v1064
    %1162 = vmatprep.subr.bf16.mxu0 0
    %1163 = vmatpush1.bf16.msra.mxu0 0
    %1164 = vmatprep.subr.bf16.mxu0 0
    %1165 = vmatpush1.bf16.msra.mxu0 0
    %1166 = vmatprep.subr.bf16.mxu0 0
    %1167 = vmatpush1.bf16.msra.mxu0 0
    %1168 = vmatprep.subr.bf16.mxu0 0
    %1169 = vmatpush1.bf16.msra.mxu0 0
    %1170 = vmatprep.subr.bf16.mxu0 0
    %1171 = vmatpush1.bf16.msra.mxu0 0
    %1172 = vmatprep.subr.bf16.mxu0 0
    %1173 = vmatpush1.bf16.msra.mxu0 0
    %1174 = vmatprep.subr.bf16.mxu0 0
    %1175 = vmatpush1.bf16.msra.mxu0 0
    %1176 = vmatprep.subr.bf16.mxu0 0
    %1177 = vmatpush1.bf16.msra.mxu0 0
    %1178 = vmatprep.mubr.bf16.mxu0 0
    %1179 = vmatmul.mubr.bf16.gmra.mrb[0].mxu0 %v927
    %v1180 = vpop.f32.mrb[0].mxu0
    %v1181 = vadd.f32 %v1101, %v1180
    %v1182 = vpop.f32.mrb[0].mxu0
    %v1183 = vpop.f32.mrb[0].mxu0
    %v1184 = vpop.f32.mrb[0].mxu0
    %1185 = vdwg.mxu0
    %v1186 = vadd.f32 %v926, %v1140
    %v1187 = vxor.u32 %v1186, 2147483648
    %v1188 = vmul.f32 %v1187, 1.442695
    %v1189 = vpow.pop %v1188
    %v1190 = vadd.f32 %v1189, 1.0
    %v1191 = vrcp.pop %v1190
    %v1192 = vmul.f32 1.0, %v1191
    %v1194 = vrot.slane %v926, 1
    %v1196 = vadd.f32 %v1194, %v1142
    %v1197 = vxor.u32 %v1196, 2147483648
    %v1198 = vmul.f32 %v1197, 1.442695
    %v1199 = vpow.pop %v1198
    %v1200 = vadd.f32 %v1199, 1.0
    %v1201 = vrcp.pop %v1200
    %v1202 = vmul.f32 1.0, %v1201
    %v1203 = vmul.f32 %v1192, %v1181
    %v1204 = vrot.slane %v926, 2
    %v1206 = vadd.f32 %v1204, %v1203
    %v1207 = vtanh.pop %v1206
    %v1208 = vsub.f32 1.0, %v1202
    %v1209 = vmul.f32 %v1208, %v1207
    %v1210 = vmul.f32 %v1202, %v923
    %v1211 = vadd.f32 %v1209, %v1210
    %1212 = vst [vmem:[#allocation3 + $0x2] sm:$0x1] %v1211
    %s1213 = scalar_lea.vmem [#allocation2], 3
    %v1214 = vld [vmem:[%s1213] ss:$8 sm:$0x7]
    %v1215 = vpack.c.bf16 %v1211, %v1211
    %v1216 = vld [vmem:[#allocation9] sm:$0xff]
    %v1217 = vld [vmem:[#allocation9 + $0x8] sm:$0xf]
    %v1218 = vld [vmem:[#allocation9 + $0xc] sm:$0xff]
    %v1219 = vld [vmem:[#allocation9 + $0x14] sm:$0xf]
    %v1220 = vld [vmem:[#allocation9 + $0x18] sm:$0xff]
    %v1221 = vld [vmem:[#allocation9 + $0x20] sm:$0xf]
    %v1222 = vld [vmem:[#allocation9 + $0x24] sm:$0xff]
    %v1223 = vld [vmem:[#allocation9 + $0x2c] sm:$0xf]
    %v1224 = vld [vmem:[#allocation9 + $0x30] sm:$0xff]
    %v1225 = vld [vmem:[#allocation9 + $0x38] sm:$0xf]
    %v1226 = vld [vmem:[#allocation9 + $0x3c] sm:$0xff]
    %v1227 = vld [vmem:[#allocation9 + $0x44] sm:$0xf]
    %v1228 = vld [vmem:[#allocation9 + $0x48] sm:$0xff]
    %v1229 = vld [vmem:[#allocation9 + $0x50] sm:$0xf]
    %v1230 = vld [vmem:[#allocation9 + $0x54] sm:$0xff]
    %v1231 = vld [vmem:[#allocation9 + $0x5c] sm:$0xf]
    %v1232 = vld [vmem:[#allocation9 + $0x60] sm:$0xff]
    %v1233 = vld [vmem:[#allocation9 + $0x68] sm:$0xf]
    %v1234 = vld [vmem:[#allocation9 + $0x6c] sm:$0xff]
    %v1235 = vld [vmem:[#allocation9 + $0x74] sm:$0xf]
    %v1236 = vld [vmem:[#allocation9 + $0x78] sm:$0xff]
    %v1237 = vld [vmem:[#allocation9 + $0x80] sm:$0xf]
    %v1238 = vld [vmem:[#allocation9 + $0x84] sm:$0xff]
    %v1239 = vld [vmem:[#allocation9 + $0x8c] sm:$0xf]
    %v1240 = vld [vmem:[#allocation9 + $0x90] sm:$0xff]
    %v1241 = vld [vmem:[#allocation9 + $0x98] sm:$0xf]
    %v1242 = vld [vmem:[#allocation9 + $0x9c] sm:$0xff]
    %v1243 = vld [vmem:[#allocation9 + $0xa4] sm:$0xf]
    %v1244 = vld [vmem:[#allocation9 + $0xa8] sm:$0xff]
    %v1245 = vld [vmem:[#allocation9 + $0xb0] sm:$0xf]
    %v1246 = vld [vmem:[#allocation9 + $0xb4] sm:$0xff]
    %v1247 = vld [vmem:[#allocation9 + $0xbc] sm:$0xf]
    %v1248 = vld [vmem:[%s4] sm:$0x7]
    %v1281 = vunpack.c.l.b16 %v1216
    %v1282 = vunpack.c.h.b16 %v1216
    %v1283 = vunpack.c.l.b16 %v1217
    %v1284 = vunpack.c.l.b16 %v1218
    %v1285 = vunpack.c.h.b16 %v1218
    %v1286 = vunpack.c.l.b16 %v1219
    %v1287 = vunpack.c.l.b16 %v1220
    %v1288 = vunpack.c.h.b16 %v1220
    %v1289 = vunpack.c.l.b16 %v1221
    %v1290 = vunpack.c.l.b16 %v1222
    %v1291 = vunpack.c.h.b16 %v1222
    %v1292 = vunpack.c.l.b16 %v1223
    %v1293 = vunpack.c.l.b16 %v1224
    %v1294 = vunpack.c.h.b16 %v1224
    %v1295 = vunpack.c.l.b16 %v1225
    %v1296 = vunpack.c.l.b16 %v1226
    %v1297 = vunpack.c.h.b16 %v1226
    %v1298 = vunpack.c.l.b16 %v1227
    %v1299 = vunpack.c.l.b16 %v1228
    %v1300 = vunpack.c.h.b16 %v1228
    %v1301 = vunpack.c.l.b16 %v1229
    %v1302 = vunpack.c.l.b16 %v1230
    %v1303 = vunpack.c.h.b16 %v1230
    %v1304 = vunpack.c.l.b16 %v1231
    %v1305 = vunpack.c.l.b16 %v1232
    %v1306 = vunpack.c.h.b16 %v1232
    %v1307 = vunpack.c.l.b16 %v1233
    %v1308 = vunpack.c.l.b16 %v1234
    %v1309 = vunpack.c.h.b16 %v1234
    %v1310 = vunpack.c.l.b16 %v1235
    %v1311 = vunpack.c.l.b16 %v1236
    %v1312 = vunpack.c.h.b16 %v1236
    %v1313 = vunpack.c.l.b16 %v1237
    %v1314 = vunpack.c.l.b16 %v1238
    %v1315 = vunpack.c.h.b16 %v1238
    %v1316 = vunpack.c.l.b16 %v1239
    %v1317 = vunpack.c.l.b16 %v1240
    %v1318 = vunpack.c.h.b16 %v1240
    %v1319 = vunpack.c.l.b16 %v1241
    %v1320 = vunpack.c.l.b16 %v1242
    %v1321 = vunpack.c.h.b16 %v1242
    %v1322 = vunpack.c.l.b16 %v1243
    %v1323 = vunpack.c.l.b16 %v1244
    %v1324 = vunpack.c.h.b16 %v1244
    %v1325 = vunpack.c.l.b16 %v1245
    %v1326 = vunpack.c.l.b16 %v1246
    %v1327 = vunpack.c.h.b16 %v1246
    %v1328 = vunpack.c.l.b16 %v1247
    %v1329 = vpack.c.b16 %v1284, %v1281
    %v1330 = vpack.c.b16 %v1285, %v1282
    %v1331 = vpack.c.b16 %v1286, %v1283
    %v1332 = vpack.c.b16 %v1290, %v1287
    %v1333 = vpack.c.b16 %v1291, %v1288
    %v1334 = vpack.c.b16 %v1292, %v1289
    %v1335 = vpack.c.b16 %v1296, %v1293
    %v1336 = vpack.c.b16 %v1297, %v1294
    %v1337 = vpack.c.b16 %v1298, %v1295
    %v1338 = vpack.c.b16 %v1302, %v1299
    %v1339 = vpack.c.b16 %v1303, %v1300
    %v1340 = vpack.c.b16 %v1304, %v1301
    %v1341 = vpack.c.b16 %v1308, %v1305
    %v1342 = vpack.c.b16 %v1309, %v1306
    %v1343 = vpack.c.b16 %v1310, %v1307
    %v1344 = vpack.c.b16 %v1314, %v1311
    %v1345 = vpack.c.b16 %v1315, %v1312
    %v1346 = vpack.c.b16 %v1316, %v1313
    %v1347 = vpack.c.b16 %v1320, %v1317
    %v1348 = vpack.c.b16 %v1321, %v1318
    %v1349 = vpack.c.b16 %v1322, %v1319
    %v1350 = vpack.c.b16 %v1326, %v1323
    %v1351 = vpack.c.b16 %v1327, %v1324
    %v1352 = vpack.c.b16 %v1328, %v1325
    %v1378 = vlaneseq
    %v1379 = vshrl.u32 %v1378, 7
    %v1380 = vsub.s32 0, %v1379
    %v1381 = vrot.slane %v1248, %v1380
    %v1382 = vlaneseq
    %v1383 = vshrl.u32 %v1382, 7
    %v1384 = vsub.s32 1, %v1383
    %v1385 = vrot.slane %v1248, %v1384
    %v1386 = vlaneseq
    %v1387 = vshrl.u32 %v1386, 7
    %v1388 = vsub.s32 2, %v1387
    %v1389 = vrot.slane %v1248, %v1388
    %1393 = vmatprep.subr.bf16.mxu0 %v1330
    %1394 = vmatpush1.bf16.msra.mxu0 %v1329
    %1395 = vmatprep.subr.bf16.mxu0 %v1333
    %1396 = vmatpush1.bf16.msra.mxu0 %v1332
    %1397 = vmatprep.subr.bf16.mxu0 %v1336
    %1398 = vmatpush1.bf16.msra.mxu0 %v1335
    %1399 = vmatprep.subr.bf16.mxu0 %v1339
    %1400 = vmatpush1.bf16.msra.mxu0 %v1338
    %1401 = vmatprep.subr.bf16.mxu0 %v1342
    %1402 = vmatpush1.bf16.msra.mxu0 %v1341
    %1403 = vmatprep.subr.bf16.mxu0 %v1345
    %1404 = vmatpush1.bf16.msra.mxu0 %v1344
    %1405 = vmatprep.subr.bf16.mxu0 %v1348
    %1406 = vmatpush1.bf16.msra.mxu0 %v1347
    %1407 = vmatprep.subr.bf16.mxu0 %v1351
    %1408 = vmatpush1.bf16.msra.mxu0 %v1350
    %1409 = vmatprep.subr.bf16.mxu0 0
    %1410 = vmatpush1.bf16.msra.mxu0 0
    %1411 = vmatprep.subr.bf16.mxu0 0
    %1412 = vmatpush1.bf16.msra.mxu0 0
    %1413 = vmatprep.subr.bf16.mxu0 0
    %1414 = vmatpush1.bf16.msra.mxu0 0
    %1415 = vmatprep.subr.bf16.mxu0 0
    %1416 = vmatpush1.bf16.msra.mxu0 0
    %1417 = vmatprep.subr.bf16.mxu0 0
    %1418 = vmatpush1.bf16.msra.mxu0 0
    %1419 = vmatprep.subr.bf16.mxu0 0
    %1420 = vmatpush1.bf16.msra.mxu0 0
    %1421 = vmatprep.subr.bf16.mxu0 0
    %1422 = vmatpush1.bf16.msra.mxu0 0
    %1423 = vmatprep.subr.bf16.mxu0 0
    %1424 = vmatpush1.bf16.msra.mxu0 0
    %1425 = vmatprep.mubr.bf16.mxu0 0
    %1426 = vmatmul.mubr.bf16.gmra.mrb[0].mxu0 %v1215
    %v1427 = vpop.f32.mrb[0].mxu0
    %v1428 = vadd.f32 %v1381, %v1427
    %v1429 = vpop.f32.mrb[0].mxu0
    %v1430 = vadd.f32 %v1385, %v1429
    %v1431 = vpop.f32.mrb[0].mxu0
    %v1432 = vpop.f32.mrb[0].mxu0
    %1433 = vdwg.mxu0
    %1434 = vmatprep.subr.bf16.mxu0 0
    %1435 = vmatpush1.bf16.msra.mxu0 %v1331
    %1436 = vmatprep.subr.bf16.mxu0 0
    %1437 = vmatpush1.bf16.msra.mxu0 %v1334
    %1438 = vmatprep.subr.bf16.mxu0 0
    %1439 = vmatpush1.bf16.msra.mxu0 %v1337
    %1440 = vmatprep.subr.bf16.mxu0 0
    %1441 = vmatpush1.bf16.msra.mxu0 %v1340
    %1442 = vmatprep.subr.bf16.mxu0 0
    %1443 = vmatpush1.bf16.msra.mxu0 %v1343
    %1444 = vmatprep.subr.bf16.mxu0 0
    %1445 = vmatpush1.bf16.msra.mxu0 %v1346
    %1446 = vmatprep.subr.bf16.mxu0 0
    %1447 = vmatpush1.bf16.msra.mxu0 %v1349
    %1448 = vmatprep.subr.bf16.mxu0 0
    %1449 = vmatpush1.bf16.msra.mxu0 %v1352
    %1450 = vmatprep.subr.bf16.mxu0 0
    %1451 = vmatpush1.bf16.msra.mxu0 0
    %1452 = vmatprep.subr.bf16.mxu0 0
    %1453 = vmatpush1.bf16.msra.mxu0 0
    %1454 = vmatprep.subr.bf16.mxu0 0
    %1455 = vmatpush1.bf16.msra.mxu0 0
    %1456 = vmatprep.subr.bf16.mxu0 0
    %1457 = vmatpush1.bf16.msra.mxu0 0
    %1458 = vmatprep.subr.bf16.mxu0 0
    %1459 = vmatpush1.bf16.msra.mxu0 0
    %1460 = vmatprep.subr.bf16.mxu0 0
    %1461 = vmatpush1.bf16.msra.mxu0 0
    %1462 = vmatprep.subr.bf16.mxu0 0
    %1463 = vmatpush1.bf16.msra.mxu0 0
    %1464 = vmatprep.subr.bf16.mxu0 0
    %1465 = vmatpush1.bf16.msra.mxu0 0
    %1466 = vmatprep.mubr.bf16.mxu0 0
    %1467 = vmatmul.mubr.bf16.gmra.mrb[0].mxu0 %v1215
    %v1468 = vpop.f32.mrb[0].mxu0
    %v1469 = vadd.f32 %v1389, %v1468
    %v1470 = vpop.f32.mrb[0].mxu0
    %v1471 = vpop.f32.mrb[0].mxu0
    %v1472 = vpop.f32.mrb[0].mxu0
    %1473 = vdwg.mxu0
    %v1474 = vadd.f32 %v1214, %v1428
    %v1475 = vxor.u32 %v1474, 2147483648
    %v1476 = vmul.f32 %v1475, 1.442695
    %v1477 = vpow.pop %v1476
    %v1478 = vadd.f32 %v1477, 1.0
    %v1479 = vrcp.pop %v1478
    %v1480 = vmul.f32 1.0, %v1479
    %v1482 = vrot.slane %v1214, 1
    %v1484 = vadd.f32 %v1482, %v1430
    %v1485 = vxor.u32 %v1484, 2147483648
    %v1486 = vmul.f32 %v1485, 1.442695
    %v1487 = vpow.pop %v1486
    %v1488 = vadd.f32 %v1487, 1.0
    %v1489 = vrcp.pop %v1488
    %v1490 = vmul.f32 1.0, %v1489
    %v1491 = vmul.f32 %v1480, %v1469
    %v1492 = vrot.slane %v1214, 2
    %v1494 = vadd.f32 %v1492, %v1491
    %v1495 = vtanh.pop %v1494
    %v1496 = vsub.f32 1.0, %v1490
    %v1497 = vmul.f32 %v1496, %v1495
    %v1498 = vmul.f32 %v1490, %v1211
    %v1499 = vadd.f32 %v1497, %v1498
    %1500 = vst [vmem:[#allocation3 + $0x3] sm:$0x1] %v1499
    %s1501 = scalar_lea.vmem [#allocation2], 4
    %v1502 = vld [vmem:[%s1501] ss:$8 sm:$0x7]
    %v1503 = vpack.c.bf16 %v1499, %v1499
    %v1504 = vld [vmem:[#allocation9] sm:$0xff]
    %v1505 = vld [vmem:[#allocation9 + $0x8] sm:$0xf]
    %v1506 = vld [vmem:[#allocation9 + $0xc] sm:$0xff]
    %v1507 = vld [vmem:[#allocation9 + $0x14] sm:$0xf]
    %v1508 = vld [vmem:[#allocation9 + $0x18] sm:$0xff]
    %v1509 = vld [vmem:[#allocation9 + $0x20] sm:$0xf]
    %v1510 = vld [vmem:[#allocation9 + $0x24] sm:$0xff]
    %v1511 = vld [vmem:[#allocation9 + $0x2c] sm:$0xf]
    %v1512 = vld [vmem:[#allocation9 + $0x30] sm:$0xff]
    %v1513 = vld [vmem:[#allocation9 + $0x38] sm:$0xf]
    %v1514 = vld [vmem:[#allocation9 + $0x3c] sm:$0xff]
    %v1515 = vld [vmem:[#allocation9 + $0x44] sm:$0xf]
    %v1516 = vld [vmem:[#allocation9 + $0x48] sm:$0xff]
    %v1517 = vld [vmem:[#allocation9 + $0x50] sm:$0xf]
    %v1518 = vld [vmem:[#allocation9 + $0x54] sm:$0xff]
    %v1519 = vld [vmem:[#allocation9 + $0x5c] sm:$0xf]
    %v1520 = vld [vmem:[#allocation9 + $0x60] sm:$0xff]
    %v1521 = vld [vmem:[#allocation9 + $0x68] sm:$0xf]
    %v1522 = vld [vmem:[#allocation9 + $0x6c] sm:$0xff]
    %v1523 = vld [vmem:[#allocation9 + $0x74] sm:$0xf]
    %v1524 = vld [vmem:[#allocation9 + $0x78] sm:$0xff]
    %v1525 = vld [vmem:[#allocation9 + $0x80] sm:$0xf]
    %v1526 = vld [vmem:[#allocation9 + $0x84] sm:$0xff]
    %v1527 = vld [vmem:[#allocation9 + $0x8c] sm:$0xf]
    %v1528 = vld [vmem:[#allocation9 + $0x90] sm:$0xff]
    %v1529 = vld [vmem:[#allocation9 + $0x98] sm:$0xf]
    %v1530 = vld [vmem:[#allocation9 + $0x9c] sm:$0xff]
    %v1531 = vld [vmem:[#allocation9 + $0xa4] sm:$0xf]
    %v1532 = vld [vmem:[#allocation9 + $0xa8] sm:$0xff]
    %v1533 = vld [vmem:[#allocation9 + $0xb0] sm:$0xf]
    %v1534 = vld [vmem:[#allocation9 + $0xb4] sm:$0xff]
    %v1535 = vld [vmem:[#allocation9 + $0xbc] sm:$0xf]
    %v1536 = vld [vmem:[%s4] sm:$0x7]
    %v1569 = vunpack.c.l.b16 %v1504
    %v1570 = vunpack.c.h.b16 %v1504
    %v1571 = vunpack.c.l.b16 %v1505
    %v1572 = vunpack.c.l.b16 %v1506
    %v1573 = vunpack.c.h.b16 %v1506
    %v1574 = vunpack.c.l.b16 %v1507
    %v1575 = vunpack.c.l.b16 %v1508
    %v1576 = vunpack.c.h.b16 %v1508
    %v1577 = vunpack.c.l.b16 %v1509
    %v1578 = vunpack.c.l.b16 %v1510
    %v1579 = vunpack.c.h.b16 %v1510
    %v1580 = vunpack.c.l.b16 %v1511
    %v1581 = vunpack.c.l.b16 %v1512
    %v1582 = vunpack.c.h.b16 %v1512
    %v1583 = vunpack.c.l.b16 %v1513
    %v1584 = vunpack.c.l.b16 %v1514
    %v1585 = vunpack.c.h.b16 %v1514
    %v1586 = vunpack.c.l.b16 %v1515
    %v1587 = vunpack.c.l.b16 %v1516
    %v1588 = vunpack.c.h.b16 %v1516
    %v1589 = vunpack.c.l.b16 %v1517
    %v1590 = vunpack.c.l.b16 %v1518
    %v1591 = vunpack.c.h.b16 %v1518
    %v1592 = vunpack.c.l.b16 %v1519
    %v1593 = vunpack.c.l.b16 %v1520
    %v1594 = vunpack.c.h.b16 %v1520
    %v1595 = vunpack.c.l.b16 %v1521
    %v1596 = vunpack.c.l.b16 %v1522
    %v1597 = vunpack.c.h.b16 %v1522
    %v1598 = vunpack.c.l.b16 %v1523
    %v1599 = vunpack.c.l.b16 %v1524
    %v1600 = vunpack.c.h.b16 %v1524
    %v1601 = vunpack.c.l.b16 %v1525
    %v1602 = vunpack.c.l.b16 %v1526
    %v1603 = vunpack.c.h.b16 %v1526
    %v1604 = vunpack.c.l.b16 %v1527
    %v1605 = vunpack.c.l.b16 %v1528
    %v1606 = vunpack.c.h.b16 %v1528
    %v1607 = vunpack.c.l.b16 %v1529
    %v1608 = vunpack.c.l.b16 %v1530
    %v1609 = vunpack.c.h.b16 %v1530
    %v1610 = vunpack.c.l.b16 %v1531
    %v1611 = vunpack.c.l.b16 %v1532
    %v1612 = vunpack.c.h.b16 %v1532
    %v1613 = vunpack.c.l.b16 %v1533
    %v1614 = vunpack.c.l.b16 %v1534
    %v1615 = vunpack.c.h.b16 %v1534
    %v1616 = vunpack.c.l.b16 %v1535
    %v1617 = vpack.c.b16 %v1572, %v1569
    %v1618 = vpack.c.b16 %v1573, %v1570
    %v1619 = vpack.c.b16 %v1574, %v1571
    %v1620 = vpack.c.b16 %v1578, %v1575
    %v1621 = vpack.c.b16 %v1579, %v1576
    %v1622 = vpack.c.b16 %v1580, %v1577
    %v1623 = vpack.c.b16 %v1584, %v1581
    %v1624 = vpack.c.b16 %v1585, %v1582
    %v1625 = vpack.c.b16 %v1586, %v1583
    %v1626 = vpack.c.b16 %v1590, %v1587
    %v1627 = vpack.c.b16 %v1591, %v1588
    %v1628 = vpack.c.b16 %v1592, %v1589
    %v1629 = vpack.c.b16 %v1596, %v1593
    %v1630 = vpack.c.b16 %v1597, %v1594
    %v1631 = vpack.c.b16 %v1598, %v1595
    %v1632 = vpack.c.b16 %v1602, %v1599
    %v1633 = vpack.c.b16 %v1603, %v1600
    %v1634 = vpack.c.b16 %v1604, %v1601
    %v1635 = vpack.c.b16 %v1608, %v1605
    %v1636 = vpack.c.b16 %v1609, %v1606
    %v1637 = vpack.c.b16 %v1610, %v1607
    %v1638 = vpack.c.b16 %v1614, %v1611
    %v1639 = vpack.c.b16 %v1615, %v1612
    %v1640 = vpack.c.b16 %v1616, %v1613
    %v1666 = vlaneseq
    %v1667 = vshrl.u32 %v1666, 7
    %v1668 = vsub.s32 0, %v1667
    %v1669 = vrot.slane %v1536, %v1668
    %v1670 = vlaneseq
    %v1671 = vshrl.u32 %v1670, 7
    %v1672 = vsub.s32 1, %v1671
    %v1673 = vrot.slane %v1536, %v1672
    %v1674 = vlaneseq
    %v1675 = vshrl.u32 %v1674, 7
    %v1676 = vsub.s32 2, %v1675
    %v1677 = vrot.slane %v1536, %v1676
    %1681 = vmatprep.subr.bf16.mxu0 %v1618
    %1682 = vmatpush1.bf16.msra.mxu0 %v1617
    %1683 = vmatprep.subr.bf16.mxu0 %v1621
    %1684 = vmatpush1.bf16.msra.mxu0 %v1620
    %1685 = vmatprep.subr.bf16.mxu0 %v1624
    %1686 = vmatpush1.bf16.msra.mxu0 %v1623
    %1687 = vmatprep.subr.bf16.mxu0 %v1627
    %1688 = vmatpush1.bf16.msra.mxu0 %v1626
    %1689 = vmatprep.subr.bf16.mxu0 %v1630
    %1690 = vmatpush1.bf16.msra.mxu0 %v1629
    %1691 = vmatprep.subr.bf16.mxu0 %v1633
    %1692 = vmatpush1.bf16.msra.mxu0 %v1632
    %1693 = vmatprep.subr.bf16.mxu0 %v1636
    %1694 = vmatpush1.bf16.msra.mxu0 %v1635
    %1695 = vmatprep.subr.bf16.mxu0 %v1639
    %1696 = vmatpush1.bf16.msra.mxu0 %v1638
    %1697 = vmatprep.subr.bf16.mxu0 0
    %1698 = vmatpush1.bf16.msra.mxu0 0
    %1699 = vmatprep.subr.bf16.mxu0 0
    %1700 = vmatpush1.bf16.msra.mxu0 0
    %1701 = vmatprep.subr.bf16.mxu0 0
    %1702 = vmatpush1.bf16.msra.mxu0 0
    %1703 = vmatprep.subr.bf16.mxu0 0
    %1704 = vmatpush1.bf16.msra.mxu0 0
    %1705 = vmatprep.subr.bf16.mxu0 0
    %1706 = vmatpush1.bf16.msra.mxu0 0
    %1707 = vmatprep.subr.bf16.mxu0 0
    %1708 = vmatpush1.bf16.msra.mxu0 0
    %1709 = vmatprep.subr.bf16.mxu0 0
    %1710 = vmatpush1.bf16.msra.mxu0 0
    %1711 = vmatprep.subr.bf16.mxu0 0
    %1712 = vmatpush1.bf16.msra.mxu0 0
    %1713 = vmatprep.mubr.bf16.mxu0 0
    %1714 = vmatmul.mubr.bf16.gmra.mrb[0].mxu0 %v1503
    %v1715 = vpop.f32.mrb[0].mxu0
    %v1716 = vadd.f32 %v1669, %v1715
    %v1717 = vpop.f32.mrb[0].mxu0
    %v1718 = vadd.f32 %v1673, %v1717
    %v1719 = vpop.f32.mrb[0].mxu0
    %v1720 = vpop.f32.mrb[0].mxu0
    %1721 = vdwg.mxu0
    %1722 = vmatprep.subr.bf16.mxu0 0
    %1723 = vmatpush1.bf16.msra.mxu0 %v1619
    %1724 = vmatprep.subr.bf16.mxu0 0
    %1725 = vmatpush1.bf16.msra.mxu0 %v1622
    %1726 = vmatprep.subr.bf16.mxu0 0
    %1727 = vmatpush1.bf16.msra.mxu0 %v1625
    %1728 = vmatprep.subr.bf16.mxu0 0
    %1729 = vmatpush1.bf16.msra.mxu0 %v1628
    %1730 = vmatprep.subr.bf16.mxu0 0
    %1731 = vmatpush1.bf16.msra.mxu0 %v1631
    %1732 = vmatprep.subr.bf16.mxu0 0
    %1733 = vmatpush1.bf16.msra.mxu0 %v1634
    %1734 = vmatprep.subr.bf16.mxu0 0
    %1735 = vmatpush1.bf16.msra.mxu0 %v1637
    %1736 = vmatprep.subr.bf16.mxu0 0
    %1737 = vmatpush1.bf16.msra.mxu0 %v1640
    %1738 = vmatprep.subr.bf16.mxu0 0
    %1739 = vmatpush1.bf16.msra.mxu0 0
    %1740 = vmatprep.subr.bf16.mxu0 0
    %1741 = vmatpush1.bf16.msra.mxu0 0
    %1742 = vmatprep.subr.bf16.mxu0 0
    %1743 = vmatpush1.bf16.msra.mxu0 0
    %1744 = vmatprep.subr.bf16.mxu0 0
    %1745 = vmatpush1.bf16.msra.mxu0 0
    %1746 = vmatprep.subr.bf16.mxu0 0
    %1747 = vmatpush1.bf16.msra.mxu0 0
    %1748 = vmatprep.subr.bf16.mxu0 0
    %1749 = vmatpush1.bf16.msra.mxu0 0
    %1750 = vmatprep.subr.bf16.mxu0 0
    %1751 = vmatpush1.bf16.msra.mxu0 0
    %1752 = vmatprep.subr.bf16.mxu0 0
    %1753 = vmatpush1.bf16.msra.mxu0 0
    %1754 = vmatprep.mubr.bf16.mxu0 0
    %1755 = vmatmul.mubr.bf16.gmra.mrb[0].mxu0 %v1503
    %v1756 = vpop.f32.mrb[0].mxu0
    %v1757 = vadd.f32 %v1677, %v1756
    %v1758 = vpop.f32.mrb[0].mxu0
    %v1759 = vpop.f32.mrb[0].mxu0
    %v1760 = vpop.f32.mrb[0].mxu0
    %1761 = vdwg.mxu0
    %v1762 = vadd.f32 %v1502, %v1716
    %v1763 = vxor.u32 %v1762, 2147483648
    %v1764 = vmul.f32 %v1763, 1.442695
    %v1765 = vpow.pop %v1764
    %v1766 = vadd.f32 %v1765, 1.0
    %v1767 = vrcp.pop %v1766
    %v1768 = vmul.f32 1.0, %v1767
    %v1770 = vrot.slane %v1502, 1
    %v1772 = vadd.f32 %v1770, %v1718
    %v1773 = vxor.u32 %v1772, 2147483648
    %v1774 = vmul.f32 %v1773, 1.442695
    %v1775 = vpow.pop %v1774
    %v1776 = vadd.f32 %v1775, 1.0
    %v1777 = vrcp.pop %v1776
    %v1778 = vmul.f32 1.0, %v1777
    %v1779 = vmul.f32 %v1768, %v1757
    %v1780 = vrot.slane %v1502, 2
    %v1782 = vadd.f32 %v1780, %v1779
    %v1783 = vtanh.pop %v1782
    %v1784 = vsub.f32 1.0, %v1778
    %v1785 = vmul.f32 %v1784, %v1783
    %v1786 = vmul.f32 %v1778, %v1499
    %v1787 = vadd.f32 %v1785, %v1786
    %1788 = vst [vmem:[#allocation3 + $0x4] sm:$0x1] %v1787
    %s1789 = scalar_lea.vmem [#allocation2], 5
    %v1790 = vld [vmem:[%s1789] ss:$8 sm:$0x7]
    %v1791 = vpack.c.bf16 %v1787, %v1787
    %v1792 = vld [vmem:[#allocation9] sm:$0xff]
    %v1793 = vld [vmem:[#allocation9 + $0x8] sm:$0xf]
    %v1794 = vld [vmem:[#allocation9 + $0xc] sm:$0xff]
    %v1795 = vld [vmem:[#allocation9 + $0x14] sm:$0xf]
    %v1796 = vld [vmem:[#allocation9 + $0x18] sm:$0xff]
    %v1797 = vld [vmem:[#allocation9 + $0x20] sm:$0xf]
    %v1798 = vld [vmem:[#allocation9 + $0x24] sm:$0xff]
    %v1799 = vld [vmem:[#allocation9 + $0x2c] sm:$0xf]
    %v1800 = vld [vmem:[#allocation9 + $0x30] sm:$0xff]
    %v1801 = vld [vmem:[#allocation9 + $0x38] sm:$0xf]
    %v1802 = vld [vmem:[#allocation9 + $0x3c] sm:$0xff]
    %v1803 = vld [vmem:[#allocation9 + $0x44] sm:$0xf]
    %v1804 = vld [vmem:[#allocation9 + $0x48] sm:$0xff]
    %v1805 = vld [vmem:[#allocation9 + $0x50] sm:$0xf]
    %v1806 = vld [vmem:[#allocation9 + $0x54] sm:$0xff]
    %v1807 = vld [vmem:[#allocation9 + $0x5c] sm:$0xf]
    %v1808 = vld [vmem:[#allocation9 + $0x60] sm:$0xff]
    %v1809 = vld [vmem:[#allocation9 + $0x68] sm:$0xf]
    %v1810 = vld [vmem:[#allocation9 + $0x6c] sm:$0xff]
    %v1811 = vld [vmem:[#allocation9 + $0x74] sm:$0xf]
    %v1812 = vld [vmem:[#allocation9 + $0x78] sm:$0xff]
    %v1813 = vld [vmem:[#allocation9 + $0x80] sm:$0xf]
    %v1814 = vld [vmem:[#allocation9 + $0x84] sm:$0xff]
    %v1815 = vld [vmem:[#allocation9 + $0x8c] sm:$0xf]
    %v1816 = vld [vmem:[#allocation9 + $0x90] sm:$0xff]
    %v1817 = vld [vmem:[#allocation9 + $0x98] sm:$0xf]
    %v1818 = vld [vmem:[#allocation9 + $0x9c] sm:$0xff]
    %v1819 = vld [vmem:[#allocation9 + $0xa4] sm:$0xf]
    %v1820 = vld [vmem:[#allocation9 + $0xa8] sm:$0xff]
    %v1821 = vld [vmem:[#allocation9 + $0xb0] sm:$0xf]
    %v1822 = vld [vmem:[#allocation9 + $0xb4] sm:$0xff]
    %v1823 = vld [vmem:[#allocation9 + $0xbc] sm:$0xf]
    %v1824 = vld [vmem:[%s4] sm:$0x7]
    %v1857 = vunpack.c.l.b16 %v1792
    %v1858 = vunpack.c.h.b16 %v1792
    %v1859 = vunpack.c.l.b16 %v1793
    %v1860 = vunpack.c.l.b16 %v1794
    %v1861 = vunpack.c.h.b16 %v1794
    %v1862 = vunpack.c.l.b16 %v1795
    %v1863 = vunpack.c.l.b16 %v1796
    %v1864 = vunpack.c.h.b16 %v1796
    %v1865 = vunpack.c.l.b16 %v1797
    %v1866 = vunpack.c.l.b16 %v1798
    %v1867 = vunpack.c.h.b16 %v1798
    %v1868 = vunpack.c.l.b16 %v1799
    %v1869 = vunpack.c.l.b16 %v1800
    %v1870 = vunpack.c.h.b16 %v1800
    %v1871 = vunpack.c.l.b16 %v1801
    %v1872 = vunpack.c.l.b16 %v1802
    %v1873 = vunpack.c.h.b16 %v1802
    %v1874 = vunpack.c.l.b16 %v1803
    %v1875 = vunpack.c.l.b16 %v1804
    %v1876 = vunpack.c.h.b16 %v1804
    %v1877 = vunpack.c.l.b16 %v1805
    %v1878 = vunpack.c.l.b16 %v1806
    %v1879 = vunpack.c.h.b16 %v1806
    %v1880 = vunpack.c.l.b16 %v1807
    %v1881 = vunpack.c.l.b16 %v1808
    %v1882 = vunpack.c.h.b16 %v1808
    %v1883 = vunpack.c.l.b16 %v1809
    %v1884 = vunpack.c.l.b16 %v1810
    %v1885 = vunpack.c.h.b16 %v1810
    %v1886 = vunpack.c.l.b16 %v1811
    %v1887 = vunpack.c.l.b16 %v1812
    %v1888 = vunpack.c.h.b16 %v1812
    %v1889 = vunpack.c.l.b16 %v1813
    %v1890 = vunpack.c.l.b16 %v1814
    %v1891 = vunpack.c.h.b16 %v1814
    %v1892 = vunpack.c.l.b16 %v1815
    %v1893 = vunpack.c.l.b16 %v1816
    %v1894 = vunpack.c.h.b16 %v1816
    %v1895 = vunpack.c.l.b16 %v1817
    %v1896 = vunpack.c.l.b16 %v1818
    %v1897 = vunpack.c.h.b16 %v1818
    %v1898 = vunpack.c.l.b16 %v1819
    %v1899 = vunpack.c.l.b16 %v1820
    %v1900 = vunpack.c.h.b16 %v1820
    %v1901 = vunpack.c.l.b16 %v1821
    %v1902 = vunpack.c.l.b16 %v1822
    %v1903 = vunpack.c.h.b16 %v1822
    %v1904 = vunpack.c.l.b16 %v1823
    %v1905 = vpack.c.b16 %v1860, %v1857
    %v1906 = vpack.c.b16 %v1861, %v1858
    %v1907 = vpack.c.b16 %v1862, %v1859
    %v1908 = vpack.c.b16 %v1866, %v1863
    %v1909 = vpack.c.b16 %v1867, %v1864
    %v1910 = vpack.c.b16 %v1868, %v1865
    %v1911 = vpack.c.b16 %v1872, %v1869
    %v1912 = vpack.c.b16 %v1873, %v1870
    %v1913 = vpack.c.b16 %v1874, %v1871
    %v1914 = vpack.c.b16 %v1878, %v1875
    %v1915 = vpack.c.b16 %v1879, %v1876
    %v1916 = vpack.c.b16 %v1880, %v1877
    %v1917 = vpack.c.b16 %v1884, %v1881
    %v1918 = vpack.c.b16 %v1885, %v1882
    %v1919 = vpack.c.b16 %v1886, %v1883
    %v1920 = vpack.c.b16 %v1890, %v1887
    %v1921 = vpack.c.b16 %v1891, %v1888
    %v1922 = vpack.c.b16 %v1892, %v1889
    %v1923 = vpack.c.b16 %v1896, %v1893
    %v1924 = vpack.c.b16 %v1897, %v1894
    %v1925 = vpack.c.b16 %v1898, %v1895
    %v1926 = vpack.c.b16 %v1902, %v1899
    %v1927 = vpack.c.b16 %v1903, %v1900
    %v1928 = vpack.c.b16 %v1904, %v1901
    %v1954 = vlaneseq
    %v1955 = vshrl.u32 %v1954, 7
    %v1956 = vsub.s32 0, %v1955
    %v1957 = vrot.slane %v1824, %v1956
    %v1958 = vlaneseq
    %v1959 = vshrl.u32 %v1958, 7
    %v1960 = vsub.s32 1, %v1959
    %v1961 = vrot.slane %v1824, %v1960
    %v1962 = vlaneseq
    %v1963 = vshrl.u32 %v1962, 7
    %v1964 = vsub.s32 2, %v1963
    %v1965 = vrot.slane %v1824, %v1964
    %1969 = vmatprep.subr.bf16.mxu0 %v1906
    %1970 = vmatpush1.bf16.msra.mxu0 %v1905
    %1971 = vmatprep.subr.bf16.mxu0 %v1909
    %1972 = vmatpush1.bf16.msra.mxu0 %v1908
    %1973 = vmatprep.subr.bf16.mxu0 %v1912
    %1974 = vmatpush1.bf16.msra.mxu0 %v1911
    %1975 = vmatprep.subr.bf16.mxu0 %v1915
    %1976 = vmatpush1.bf16.msra.mxu0 %v1914
    %1977 = vmatprep.subr.bf16.mxu0 %v1918
    %1978 = vmatpush1.bf16.msra.mxu0 %v1917
    %1979 = vmatprep.subr.bf16.mxu0 %v1921
    %1980 = vmatpush1.bf16.msra.mxu0 %v1920
    %1981 = vmatprep.subr.bf16.mxu0 %v1924
    %1982 = vmatpush1.bf16.msra.mxu0 %v1923
    %1983 = vmatprep.subr.bf16.mxu0 %v1927
    %1984 = vmatpush1.bf16.msra.mxu0 %v1926
    %1985 = vmatprep.subr.bf16.mxu0 0
    %1986 = vmatpush1.bf16.msra.mxu0 0
    %1987 = vmatprep.subr.bf16.mxu0 0
    %1988 = vmatpush1.bf16.msra.mxu0 0
    %1989 = vmatprep.subr.bf16.mxu0 0
    %1990 = vmatpush1.bf16.msra.mxu0 0
    %1991 = vmatprep.subr.bf16.mxu0 0
    %1992 = vmatpush1.bf16.msra.mxu0 0
    %1993 = vmatprep.subr.bf16.mxu0 0
    %1994 = vmatpush1.bf16.msra.mxu0 0
    %1995 = vmatprep.subr.bf16.mxu0 0
    %1996 = vmatpush1.bf16.msra.mxu0 0
    %1997 = vmatprep.subr.bf16.mxu0 0
    %1998 = vmatpush1.bf16.msra.mxu0 0
    %1999 = vmatprep.subr.bf16.mxu0 0
    %2000 = vmatpush1.bf16.msra.mxu0 0
    %2001 = vmatprep.mubr.bf16.mxu0 0
    %2002 = vmatmul.mubr.bf16.gmra.mrb[0].mxu0 %v1791
    %v2003 = vpop.f32.mrb[0].mxu0
    %v2004 = vadd.f32 %v1957, %v2003
    %v2005 = vpop.f32.mrb[0].mxu0
    %v2006 = vadd.f32 %v1961, %v2005
    %v2007 = vpop.f32.mrb[0].mxu0
    %v2008 = vpop.f32.mrb[0].mxu0
    %2009 = vdwg.mxu0
    %2010 = vmatprep.subr.bf16.mxu0 0
    %2011 = vmatpush1.bf16.msra.mxu0 %v1907
    %2012 = vmatprep.subr.bf16.mxu0 0
    %2013 = vmatpush1.bf16.msra.mxu0 %v1910
    %2014 = vmatprep.subr.bf16.mxu0 0
    %2015 = vmatpush1.bf16.msra.mxu0 %v1913
    %2016 = vmatprep.subr.bf16.mxu0 0
    %2017 = vmatpush1.bf16.msra.mxu0 %v1916
    %2018 = vmatprep.subr.bf16.mxu0 0
    %2019 = vmatpush1.bf16.msra.mxu0 %v1919
    %2020 = vmatprep.subr.bf16.mxu0 0
    %2021 = vmatpush1.bf16.msra.mxu0 %v1922
    %2022 = vmatprep.subr.bf16.mxu0 0
    %2023 = vmatpush1.bf16.msra.mxu0 %v1925
    %2024 = vmatprep.subr.bf16.mxu0 0
    %2025 = vmatpush1.bf16.msra.mxu0 %v1928
    %2026 = vmatprep.subr.bf16.mxu0 0
    %2027 = vmatpush1.bf16.msra.mxu0 0
    %2028 = vmatprep.subr.bf16.mxu0 0
    %2029 = vmatpush1.bf16.msra.mxu0 0
    %2030 = vmatprep.subr.bf16.mxu0 0
    %2031 = vmatpush1.bf16.msra.mxu0 0
    %2032 = vmatprep.subr.bf16.mxu0 0
    %2033 = vmatpush1.bf16.msra.mxu0 0
    %2034 = vmatprep.subr.bf16.mxu0 0
    %2035 = vmatpush1.bf16.msra.mxu0 0
    %2036 = vmatprep.subr.bf16.mxu0 0
    %2037 = vmatpush1.bf16.msra.mxu0 0
    %2038 = vmatprep.subr.bf16.mxu0 0
    %2039 = vmatpush1.bf16.msra.mxu0 0
    %2040 = vmatprep.subr.bf16.mxu0 0
    %2041 = vmatpush1.bf16.msra.mxu0 0
    %2042 = vmatprep.mubr.bf16.mxu0 0
    %2043 = vmatmul.mubr.bf16.gmra.mrb[0].mxu0 %v1791
    %v2044 = vpop.f32.mrb[0].mxu0
    %v2045 = vadd.f32 %v1965, %v2044
    %v2046 = vpop.f32.mrb[0].mxu0
    %v2047 = vpop.f32.mrb[0].mxu0
    %v2048 = vpop.f32.mrb[0].mxu0
    %2049 = vdwg.mxu0
    %v2050 = vadd.f32 %v1790, %v2004
    %v2051 = vxor.u32 %v2050, 2147483648
    %v2052 = vmul.f32 %v2051, 1.442695
    %v2053 = vpow.pop %v2052
    %v2054 = vadd.f32 %v2053, 1.0
    %v2055 = vrcp.pop %v2054
    %v2056 = vmul.f32 1.0, %v2055
    %v2058 = vrot.slane %v1790, 1
    %v2060 = vadd.f32 %v2058, %v2006
    %v2061 = vxor.u32 %v2060, 2147483648
    %v2062 = vmul.f32 %v2061, 1.442695
    %v2063 = vpow.pop %v2062
    %v2064 = vadd.f32 %v2063, 1.0
    %v2065 = vrcp.pop %v2064
    %v2066 = vmul.f32 1.0, %v2065
    %v2067 = vmul.f32 %v2056, %v2045
    %v2068 = vrot.slane %v1790, 2
    %v2070 = vadd.f32 %v2068, %v2067
    %v2071 = vtanh.pop %v2070
    %v2072 = vsub.f32 1.0, %v2066
    %v2073 = vmul.f32 %v2072, %v2071
    %v2074 = vmul.f32 %v2066, %v1787
    %v2075 = vadd.f32 %v2073, %v2074
    %2076 = vst [vmem:[#allocation3 + $0x5] sm:$0x1] %v2075
    %s2077 = scalar_lea.vmem [#allocation2], 6
    %v2078 = vld [vmem:[%s2077] ss:$8 sm:$0x7]
    %v2079 = vpack.c.bf16 %v2075, %v2075
    %v2080 = vld [vmem:[#allocation9] sm:$0xff]
    %v2081 = vld [vmem:[#allocation9 + $0x8] sm:$0xf]
    %v2082 = vld [vmem:[#allocation9 + $0xc] sm:$0xff]
    %v2083 = vld [vmem:[#allocation9 + $0x14] sm:$0xf]
    %v2084 = vld [vmem:[#allocation9 + $0x18] sm:$0xff]
    %v2085 = vld [vmem:[#allocation9 + $0x20] sm:$0xf]
    %v2086 = vld [vmem:[#allocation9 + $0x24] sm:$0xff]
    %v2087 = vld [vmem:[#allocation9 + $0x2c] sm:$0xf]
    %v2088 = vld [vmem:[#allocation9 + $0x30] sm:$0xff]
    %v2089 = vld [vmem:[#allocation9 + $0x38] sm:$0xf]
    %v2090 = vld [vmem:[#allocation9 + $0x3c] sm:$0xff]
    %v2091 = vld [vmem:[#allocation9 + $0x44] sm:$0xf]
    %v2092 = vld [vmem:[#allocation9 + $0x48] sm:$0xff]
    %v2093 = vld [vmem:[#allocation9 + $0x50] sm:$0xf]
    %v2094 = vld [vmem:[#allocation9 + $0x54] sm:$0xff]
    %v2095 = vld [vmem:[#allocation9 + $0x5c] sm:$0xf]
    %v2096 = vld [vmem:[#allocation9 + $0x60] sm:$0xff]
    %v2097 = vld [vmem:[#allocation9 + $0x68] sm:$0xf]
    %v2098 = vld [vmem:[#allocation9 + $0x6c] sm:$0xff]
    %v2099 = vld [vmem:[#allocation9 + $0x74] sm:$0xf]
    %v2100 = vld [vmem:[#allocation9 + $0x78] sm:$0xff]
    %v2101 = vld [vmem:[#allocation9 + $0x80] sm:$0xf]
    %v2102 = vld [vmem:[#allocation9 + $0x84] sm:$0xff]
    %v2103 = vld [vmem:[#allocation9 + $0x8c] sm:$0xf]
    %v2104 = vld [vmem:[#allocation9 + $0x90] sm:$0xff]
    %v2105 = vld [vmem:[#allocation9 + $0x98] sm:$0xf]
    %v2106 = vld [vmem:[#allocation9 + $0x9c] sm:$0xff]
    %v2107 = vld [vmem:[#allocation9 + $0xa4] sm:$0xf]
    %v2108 = vld [vmem:[#allocation9 + $0xa8] sm:$0xff]
    %v2109 = vld [vmem:[#allocation9 + $0xb0] sm:$0xf]
    %v2110 = vld [vmem:[#allocation9 + $0xb4] sm:$0xff]
    %v2111 = vld [vmem:[#allocation9 + $0xbc] sm:$0xf]
    %v2112 = vld [vmem:[%s4] sm:$0x7]
    %v2145 = vunpack.c.l.b16 %v2080
    %v2146 = vunpack.c.h.b16 %v2080
    %v2147 = vunpack.c.l.b16 %v2081
    %v2148 = vunpack.c.l.b16 %v2082
    %v2149 = vunpack.c.h.b16 %v2082
    %v2150 = vunpack.c.l.b16 %v2083
    %v2151 = vunpack.c.l.b16 %v2084
    %v2152 = vunpack.c.h.b16 %v2084
    %v2153 = vunpack.c.l.b16 %v2085
    %v2154 = vunpack.c.l.b16 %v2086
    %v2155 = vunpack.c.h.b16 %v2086
    %v2156 = vunpack.c.l.b16 %v2087
    %v2157 = vunpack.c.l.b16 %v2088
    %v2158 = vunpack.c.h.b16 %v2088
    %v2159 = vunpack.c.l.b16 %v2089
    %v2160 = vunpack.c.l.b16 %v2090
    %v2161 = vunpack.c.h.b16 %v2090
    %v2162 = vunpack.c.l.b16 %v2091
    %v2163 = vunpack.c.l.b16 %v2092
    %v2164 = vunpack.c.h.b16 %v2092
    %v2165 = vunpack.c.l.b16 %v2093
    %v2166 = vunpack.c.l.b16 %v2094
    %v2167 = vunpack.c.h.b16 %v2094
    %v2168 = vunpack.c.l.b16 %v2095
    %v2169 = vunpack.c.l.b16 %v2096
    %v2170 = vunpack.c.h.b16 %v2096
    %v2171 = vunpack.c.l.b16 %v2097
    %v2172 = vunpack.c.l.b16 %v2098
    %v2173 = vunpack.c.h.b16 %v2098
    %v2174 = vunpack.c.l.b16 %v2099
    %v2175 = vunpack.c.l.b16 %v2100
    %v2176 = vunpack.c.h.b16 %v2100
    %v2177 = vunpack.c.l.b16 %v2101
    %v2178 = vunpack.c.l.b16 %v2102
    %v2179 = vunpack.c.h.b16 %v2102
    %v2180 = vunpack.c.l.b16 %v2103
    %v2181 = vunpack.c.l.b16 %v2104
    %v2182 = vunpack.c.h.b16 %v2104
    %v2183 = vunpack.c.l.b16 %v2105
    %v2184 = vunpack.c.l.b16 %v2106
    %v2185 = vunpack.c.h.b16 %v2106
    %v2186 = vunpack.c.l.b16 %v2107
    %v2187 = vunpack.c.l.b16 %v2108
    %v2188 = vunpack.c.h.b16 %v2108
    %v2189 = vunpack.c.l.b16 %v2109
    %v2190 = vunpack.c.l.b16 %v2110
    %v2191 = vunpack.c.h.b16 %v2110
    %v2192 = vunpack.c.l.b16 %v2111
    %v2193 = vpack.c.b16 %v2148, %v2145
    %v2194 = vpack.c.b16 %v2149, %v2146
    %v2195 = vpack.c.b16 %v2150, %v2147
    %v2196 = vpack.c.b16 %v2154, %v2151
    %v2197 = vpack.c.b16 %v2155, %v2152
    %v2198 = vpack.c.b16 %v2156, %v2153
    %v2199 = vpack.c.b16 %v2160, %v2157
    %v2200 = vpack.c.b16 %v2161, %v2158
    %v2201 = vpack.c.b16 %v2162, %v2159
    %v2202 = vpack.c.b16 %v2166, %v2163
    %v2203 = vpack.c.b16 %v2167, %v2164
    %v2204 = vpack.c.b16 %v2168, %v2165
    %v2205 = vpack.c.b16 %v2172, %v2169
    %v2206 = vpack.c.b16 %v2173, %v2170
    %v2207 = vpack.c.b16 %v2174, %v2171
    %v2208 = vpack.c.b16 %v2178, %v2175
    %v2209 = vpack.c.b16 %v2179, %v2176
    %v2210 = vpack.c.b16 %v2180, %v2177
    %v2211 = vpack.c.b16 %v2184, %v2181
    %v2212 = vpack.c.b16 %v2185, %v2182
    %v2213 = vpack.c.b16 %v2186, %v2183
    %v2214 = vpack.c.b16 %v2190, %v2187
    %v2215 = vpack.c.b16 %v2191, %v2188
    %v2216 = vpack.c.b16 %v2192, %v2189
    %v2242 = vlaneseq
    %v2243 = vshrl.u32 %v2242, 7
    %v2244 = vsub.s32 0, %v2243
    %v2245 = vrot.slane %v2112, %v2244
    %v2246 = vlaneseq
    %v2247 = vshrl.u32 %v2246, 7
    %v2248 = vsub.s32 1, %v2247
    %v2249 = vrot.slane %v2112, %v2248
    %v2250 = vlaneseq
    %v2251 = vshrl.u32 %v2250, 7
    %v2252 = vsub.s32 2, %v2251
    %v2253 = vrot.slane %v2112, %v2252
    %2257 = vmatprep.subr.bf16.mxu0 %v2194
    %2258 = vmatpush1.bf16.msra.mxu0 %v2193
    %2259 = vmatprep.subr.bf16.mxu0 %v2197
    %2260 = vmatpush1.bf16.msra.mxu0 %v2196
    %2261 = vmatprep.subr.bf16.mxu0 %v2200
    %2262 = vmatpush1.bf16.msra.mxu0 %v2199
    %2263 = vmatprep.subr.bf16.mxu0 %v2203
    %2264 = vmatpush1.bf16.msra.mxu0 %v2202
    %2265 = vmatprep.subr.bf16.mxu0 %v2206
    %2266 = vmatpush1.bf16.msra.mxu0 %v2205
    %2267 = vmatprep.subr.bf16.mxu0 %v2209
    %2268 = vmatpush1.bf16.msra.mxu0 %v2208
    %2269 = vmatprep.subr.bf16.mxu0 %v2212
    %2270 = vmatpush1.bf16.msra.mxu0 %v2211
    %2271 = vmatprep.subr.bf16.mxu0 %v2215
    %2272 = vmatpush1.bf16.msra.mxu0 %v2214
    %2273 = vmatprep.subr.bf16.mxu0 0
    %2274 = vmatpush1.bf16.msra.mxu0 0
    %2275 = vmatprep.subr.bf16.mxu0 0
    %2276 = vmatpush1.bf16.msra.mxu0 0
    %2277 = vmatprep.subr.bf16.mxu0 0
    %2278 = vmatpush1.bf16.msra.mxu0 0
    %2279 = vmatprep.subr.bf16.mxu0 0
    %2280 = vmatpush1.bf16.msra.mxu0 0
    %2281 = vmatprep.subr.bf16.mxu0 0
    %2282 = vmatpush1.bf16.msra.mxu0 0
    %2283 = vmatprep.subr.bf16.mxu0 0
    %2284 = vmatpush1.bf16.msra.mxu0 0
    %2285 = vmatprep.subr.bf16.mxu0 0
    %2286 = vmatpush1.bf16.msra.mxu0 0
    %2287 = vmatprep.subr.bf16.mxu0 0
    %2288 = vmatpush1.bf16.msra.mxu0 0
    %2289 = vmatprep.mubr.bf16.mxu0 0
    %2290 = vmatmul.mubr.bf16.gmra.mrb[0].mxu0 %v2079
    %v2291 = vpop.f32.mrb[0].mxu0
    %v2292 = vadd.f32 %v2245, %v2291
    %v2293 = vpop.f32.mrb[0].mxu0
    %v2294 = vadd.f32 %v2249, %v2293
    %v2295 = vpop.f32.mrb[0].mxu0
    %v2296 = vpop.f32.mrb[0].mxu0
    %2297 = vdwg.mxu0
    %2298 = vmatprep.subr.bf16.mxu0 0
    %2299 = vmatpush1.bf16.msra.mxu0 %v2195
    %2300 = vmatprep.subr.bf16.mxu0 0
    %2301 = vmatpush1.bf16.msra.mxu0 %v2198
    %2302 = vmatprep.subr.bf16.mxu0 0
    %2303 = vmatpush1.bf16.msra.mxu0 %v2201
    %2304 = vmatprep.subr.bf16.mxu0 0
    %2305 = vmatpush1.bf16.msra.mxu0 %v2204
    %2306 = vmatprep.subr.bf16.mxu0 0
    %2307 = vmatpush1.bf16.msra.mxu0 %v2207
    %2308 = vmatprep.subr.bf16.mxu0 0
    %2309 = vmatpush1.bf16.msra.mxu0 %v2210
    %2310 = vmatprep.subr.bf16.mxu0 0
    %2311 = vmatpush1.bf16.msra.mxu0 %v2213
    %2312 = vmatprep.subr.bf16.mxu0 0
    %2313 = vmatpush1.bf16.msra.mxu0 %v2216
    %2314 = vmatprep.subr.bf16.mxu0 0
    %2315 = vmatpush1.bf16.msra.mxu0 0
    %2316 = vmatprep.subr.bf16.mxu0 0
    %2317 = vmatpush1.bf16.msra.mxu0 0
    %2318 = vmatprep.subr.bf16.mxu0 0
    %2319 = vmatpush1.bf16.msra.mxu0 0
    %2320 = vmatprep.subr.bf16.mxu0 0
    %2321 = vmatpush1.bf16.msra.mxu0 0
    %2322 = vmatprep.subr.bf16.mxu0 0
    %2323 = vmatpush1.bf16.msra.mxu0 0
    %2324 = vmatprep.subr.bf16.mxu0 0
    %2325 = vmatpush1.bf16.msra.mxu0 0
    %2326 = vmatprep.subr.bf16.mxu0 0
    %2327 = vmatpush1.bf16.msra.mxu0 0
    %2328 = vmatprep.subr.bf16.mxu0 0
    %2329 = vmatpush1.bf16.msra.mxu0 0
    %2330 = vmatprep.mubr.bf16.mxu0 0
    %2331 = vmatmul.mubr.bf16.gmra.mrb[0].mxu0 %v2079
    %v2332 = vpop.f32.mrb[0].mxu0
    %v2333 = vadd.f32 %v2253, %v2332
    %v2334 = vpop.f32.mrb[0].mxu0
    %v2335 = vpop.f32.mrb[0].mxu0
    %v2336 = vpop.f32.mrb[0].mxu0
    %2337 = vdwg.mxu0
    %v2338 = vadd.f32 %v2078, %v2292
    %v2339 = vxor.u32 %v2338, 2147483648
    %v2340 = vmul.f32 %v2339, 1.442695
    %v2341 = vpow.pop %v2340
    %v2342 = vadd.f32 %v2341, 1.0
    %v2343 = vrcp.pop %v2342
    %v2344 = vmul.f32 1.0, %v2343
    %v2346 = vrot.slane %v2078, 1
    %v2348 = vadd.f32 %v2346, %v2294
    %v2349 = vxor.u32 %v2348, 2147483648
    %v2350 = vmul.f32 %v2349, 1.442695
    %v2351 = vpow.pop %v2350
    %v2352 = vadd.f32 %v2351, 1.0
    %v2353 = vrcp.pop %v2352
    %v2354 = vmul.f32 1.0, %v2353
    %v2355 = vmul.f32 %v2344, %v2333
    %v2356 = vrot.slane %v2078, 2
    %v2358 = vadd.f32 %v2356, %v2355
    %v2359 = vtanh.pop %v2358
    %v2360 = vsub.f32 1.0, %v2354
    %v2361 = vmul.f32 %v2360, %v2359
    %v2362 = vmul.f32 %v2354, %v2075
    %v2363 = vadd.f32 %v2361, %v2362
    %2364 = vst [vmem:[#allocation3 + $0x6] sm:$0x1] %v2363
    %s2365 = scalar_lea.vmem [#allocation2], 7
    %v2366 = vld [vmem:[%s2365] ss:$8 sm:$0x7]
    %v2367 = vpack.c.bf16 %v2363, %v2363
    %v2368 = vld [vmem:[#allocation9] sm:$0xff]
    %v2369 = vld [vmem:[#allocation9 + $0x8] sm:$0xf]
    %v2370 = vld [vmem:[#allocation9 + $0xc] sm:$0xff]
    %v2371 = vld [vmem:[#allocation9 + $0x14] sm:$0xf]
    %v2372 = vld [vmem:[#allocation9 + $0x18] sm:$0xff]
    %v2373 = vld [vmem:[#allocation9 + $0x20] sm:$0xf]
    %v2374 = vld [vmem:[#allocation9 + $0x24] sm:$0xff]
    %v2375 = vld [vmem:[#allocation9 + $0x2c] sm:$0xf]
    %v2376 = vld [vmem:[#allocation9 + $0x30] sm:$0xff]
    %v2377 = vld [vmem:[#allocation9 + $0x38] sm:$0xf]
    %v2378 = vld [vmem:[#allocation9 + $0x3c] sm:$0xff]
    %v2379 = vld [vmem:[#allocation9 + $0x44] sm:$0xf]
    %v2380 = vld [vmem:[#allocation9 + $0x48] sm:$0xff]
    %v2381 = vld [vmem:[#allocation9 + $0x50] sm:$0xf]
    %v2382 = vld [vmem:[#allocation9 + $0x54] sm:$0xff]
    %v2383 = vld [vmem:[#allocation9 + $0x5c] sm:$0xf]
    %v2384 = vld [vmem:[#allocation9 + $0x60] sm:$0xff]
    %v2385 = vld [vmem:[#allocation9 + $0x68] sm:$0xf]
    %v2386 = vld [vmem:[#allocation9 + $0x6c] sm:$0xff]
    %v2387 = vld [vmem:[#allocation9 + $0x74] sm:$0xf]
    %v2388 = vld [vmem:[#allocation9 + $0x78] sm:$0xff]
    %v2389 = vld [vmem:[#allocation9 + $0x80] sm:$0xf]
    %v2390 = vld [vmem:[#allocation9 + $0x84] sm:$0xff]
    %v2391 = vld [vmem:[#allocation9 + $0x8c] sm:$0xf]
    %v2392 = vld [vmem:[#allocation9 + $0x90] sm:$0xff]
    %v2393 = vld [vmem:[#allocation9 + $0x98] sm:$0xf]
    %v2394 = vld [vmem:[#allocation9 + $0x9c] sm:$0xff]
    %v2395 = vld [vmem:[#allocation9 + $0xa4] sm:$0xf]
    %v2396 = vld [vmem:[#allocation9 + $0xa8] sm:$0xff]
    %v2397 = vld [vmem:[#allocation9 + $0xb0] sm:$0xf]
    %v2398 = vld [vmem:[#allocation9 + $0xb4] sm:$0xff]
    %v2399 = vld [vmem:[#allocation9 + $0xbc] sm:$0xf]
    %v2400 = vld [vmem:[%s4] sm:$0x7]
    %v2433 = vunpack.c.l.b16 %v2368
    %v2434 = vunpack.c.h.b16 %v2368
    %v2435 = vunpack.c.l.b16 %v2369
    %v2436 = vunpack.c.l.b16 %v2370
    %v2437 = vunpack.c.h.b16 %v2370
    %v2438 = vunpack.c.l.b16 %v2371
    %v2439 = vunpack.c.l.b16 %v2372
    %v2440 = vunpack.c.h.b16 %v2372
    %v2441 = vunpack.c.l.b16 %v2373
    %v2442 = vunpack.c.l.b16 %v2374
    %v2443 = vunpack.c.h.b16 %v2374
    %v2444 = vunpack.c.l.b16 %v2375
    %v2445 = vunpack.c.l.b16 %v2376
    %v2446 = vunpack.c.h.b16 %v2376
    %v2447 = vunpack.c.l.b16 %v2377
    %v2448 = vunpack.c.l.b16 %v2378
    %v2449 = vunpack.c.h.b16 %v2378
    %v2450 = vunpack.c.l.b16 %v2379
    %v2451 = vunpack.c.l.b16 %v2380
    %v2452 = vunpack.c.h.b16 %v2380
    %v2453 = vunpack.c.l.b16 %v2381
    %v2454 = vunpack.c.l.b16 %v2382
    %v2455 = vunpack.c.h.b16 %v2382
    %v2456 = vunpack.c.l.b16 %v2383
    %v2457 = vunpack.c.l.b16 %v2384
    %v2458 = vunpack.c.h.b16 %v2384
    %v2459 = vunpack.c.l.b16 %v2385
    %v2460 = vunpack.c.l.b16 %v2386
    %v2461 = vunpack.c.h.b16 %v2386
    %v2462 = vunpack.c.l.b16 %v2387
    %v2463 = vunpack.c.l.b16 %v2388
    %v2464 = vunpack.c.h.b16 %v2388
    %v2465 = vunpack.c.l.b16 %v2389
    %v2466 = vunpack.c.l.b16 %v2390
    %v2467 = vunpack.c.h.b16 %v2390
    %v2468 = vunpack.c.l.b16 %v2391
    %v2469 = vunpack.c.l.b16 %v2392
    %v2470 = vunpack.c.h.b16 %v2392
    %v2471 = vunpack.c.l.b16 %v2393
    %v2472 = vunpack.c.l.b16 %v2394
    %v2473 = vunpack.c.h.b16 %v2394
    %v2474 = vunpack.c.l.b16 %v2395
    %v2475 = vunpack.c.l.b16 %v2396
    %v2476 = vunpack.c.h.b16 %v2396
    %v2477 = vunpack.c.l.b16 %v2397
    %v2478 = vunpack.c.l.b16 %v2398
    %v2479 = vunpack.c.h.b16 %v2398
    %v2480 = vunpack.c.l.b16 %v2399
    %v2481 = vpack.c.b16 %v2436, %v2433
    %v2482 = vpack.c.b16 %v2437, %v2434
    %v2483 = vpack.c.b16 %v2438, %v2435
    %v2484 = vpack.c.b16 %v2442, %v2439
    %v2485 = vpack.c.b16 %v2443, %v2440
    %v2486 = vpack.c.b16 %v2444, %v2441
    %v2487 = vpack.c.b16 %v2448, %v2445
    %v2488 = vpack.c.b16 %v2449, %v2446
    %v2489 = vpack.c.b16 %v2450, %v2447
    %v2490 = vpack.c.b16 %v2454, %v2451
    %v2491 = vpack.c.b16 %v2455, %v2452
    %v2492 = vpack.c.b16 %v2456, %v2453
    %v2493 = vpack.c.b16 %v2460, %v2457
    %v2494 = vpack.c.b16 %v2461, %v2458
    %v2495 = vpack.c.b16 %v2462, %v2459
    %v2496 = vpack.c.b16 %v2466, %v2463
    %v2497 = vpack.c.b16 %v2467, %v2464
    %v2498 = vpack.c.b16 %v2468, %v2465
    %v2499 = vpack.c.b16 %v2472, %v2469
    %v2500 = vpack.c.b16 %v2473, %v2470
    %v2501 = vpack.c.b16 %v2474, %v2471
    %v2502 = vpack.c.b16 %v2478, %v2475
    %v2503 = vpack.c.b16 %v2479, %v2476
    %v2504 = vpack.c.b16 %v2480, %v2477
    %v2530 = vlaneseq
    %v2531 = vshrl.u32 %v2530, 7
    %v2532 = vsub.s32 0, %v2531
    %v2533 = vrot.slane %v2400, %v2532
    %v2534 = vlaneseq
    %v2535 = vshrl.u32 %v2534, 7
    %v2536 = vsub.s32 1, %v2535
    %v2537 = vrot.slane %v2400, %v2536
    %v2538 = vlaneseq
    %v2539 = vshrl.u32 %v2538, 7
    %v2540 = vsub.s32 2, %v2539
    %v2541 = vrot.slane %v2400, %v2540
    %2545 = vmatprep.subr.bf16.mxu0 %v2482
    %2546 = vmatpush1.bf16.msra.mxu0 %v2481
    %2547 = vmatprep.subr.bf16.mxu0 %v2485
    %2548 = vmatpush1.bf16.msra.mxu0 %v2484
    %2549 = vmatprep.subr.bf16.mxu0 %v2488
    %2550 = vmatpush1.bf16.msra.mxu0 %v2487
    %2551 = vmatprep.subr.bf16.mxu0 %v2491
    %2552 = vmatpush1.bf16.msra.mxu0 %v2490
    %2553 = vmatprep.subr.bf16.mxu0 %v2494
    %2554 = vmatpush1.bf16.msra.mxu0 %v2493
    %2555 = vmatprep.subr.bf16.mxu0 %v2497
    %2556 = vmatpush1.bf16.msra.mxu0 %v2496
    %2557 = vmatprep.subr.bf16.mxu0 %v2500
    %2558 = vmatpush1.bf16.msra.mxu0 %v2499
    %2559 = vmatprep.subr.bf16.mxu0 %v2503
    %2560 = vmatpush1.bf16.msra.mxu0 %v2502
    %2561 = vmatprep.subr.bf16.mxu0 0
    %2562 = vmatpush1.bf16.msra.mxu0 0
    %2563 = vmatprep.subr.bf16.mxu0 0
    %2564 = vmatpush1.bf16.msra.mxu0 0
    %2565 = vmatprep.subr.bf16.mxu0 0
    %2566 = vmatpush1.bf16.msra.mxu0 0
    %2567 = vmatprep.subr.bf16.mxu0 0
    %2568 = vmatpush1.bf16.msra.mxu0 0
    %2569 = vmatprep.subr.bf16.mxu0 0
    %2570 = vmatpush1.bf16.msra.mxu0 0
    %2571 = vmatprep.subr.bf16.mxu0 0
    %2572 = vmatpush1.bf16.msra.mxu0 0
    %2573 = vmatprep.subr.bf16.mxu0 0
    %2574 = vmatpush1.bf16.msra.mxu0 0
    %2575 = vmatprep.subr.bf16.mxu0 0
    %2576 = vmatpush1.bf16.msra.mxu0 0
    %2577 = vmatprep.mubr.bf16.mxu0 0
    %2578 = vmatmul.mubr.bf16.gmra.mrb[0].mxu0 %v2367
    %v2579 = vpop.f32.mrb[0].mxu0
    %v2580 = vadd.f32 %v2533, %v2579
    %v2581 = vpop.f32.mrb[0].mxu0
    %v2582 = vadd.f32 %v2537, %v2581
    %v2583 = vpop.f32.mrb[0].mxu0
    %v2584 = vpop.f32.mrb[0].mxu0
    %2585 = vdwg.mxu0
    %2586 = vmatprep.subr.bf16.mxu0 0
    %2587 = vmatpush1.bf16.msra.mxu0 %v2483
    %2588 = vmatprep.subr.bf16.mxu0 0
    %2589 = vmatpush1.bf16.msra.mxu0 %v2486
    %2590 = vmatprep.subr.bf16.mxu0 0
    %2591 = vmatpush1.bf16.msra.mxu0 %v2489
    %2592 = vmatprep.subr.bf16.mxu0 0
    %2593 = vmatpush1.bf16.msra.mxu0 %v2492
    %2594 = vmatprep.subr.bf16.mxu0 0
    %2595 = vmatpush1.bf16.msra.mxu0 %v2495
    %2596 = vmatprep.subr.bf16.mxu0 0
    %2597 = vmatpush1.bf16.msra.mxu0 %v2498
    %2598 = vmatprep.subr.bf16.mxu0 0
    %2599 = vmatpush1.bf16.msra.mxu0 %v2501
    %2600 = vmatprep.subr.bf16.mxu0 0
    %2601 = vmatpush1.bf16.msra.mxu0 %v2504
    %2602 = vmatprep.subr.bf16.mxu0 0
    %2603 = vmatpush1.bf16.msra.mxu0 0
    %2604 = vmatprep.subr.bf16.mxu0 0
    %2605 = vmatpush1.bf16.msra.mxu0 0
    %2606 = vmatprep.subr.bf16.mxu0 0
    %2607 = vmatpush1.bf16.msra.mxu0 0
    %2608 = vmatprep.subr.bf16.mxu0 0
    %2609 = vmatpush1.bf16.msra.mxu0 0
    %2610 = vmatprep.subr.bf16.mxu0 0
    %2611 = vmatpush1.bf16.msra.mxu0 0
    %2612 = vmatprep.subr.bf16.mxu0 0
    %2613 = vmatpush1.bf16.msra.mxu0 0
    %2614 = vmatprep.subr.bf16.mxu0 0
    %2615 = vmatpush1.bf16.msra.mxu0 0
    %2616 = vmatprep.subr.bf16.mxu0 0
    %2617 = vmatpush1.bf16.msra.mxu0 0
    %2618 = vmatprep.mubr.bf16.mxu0 0
    %2619 = vmatmul.mubr.bf16.gmra.mrb[0].mxu0 %v2367
    %v2620 = vpop.f32.mrb[0].mxu0
    %v2621 = vadd.f32 %v2541, %v2620
    %v2622 = vpop.f32.mrb[0].mxu0
    %v2623 = vpop.f32.mrb[0].mxu0
    %v2624 = vpop.f32.mrb[0].mxu0
    %2625 = vdwg.mxu0
    %v2626 = vadd.f32 %v2366, %v2580
    %v2627 = vxor.u32 %v2626, 2147483648
    %v2628 = vmul.f32 %v2627, 1.442695
    %v2629 = vpow.pop %v2628
    %v2630 = vadd.f32 %v2629, 1.0
    %v2631 = vrcp.pop %v2630
    %v2632 = vmul.f32 1.0, %v2631
    %v2634 = vrot.slane %v2366, 1
    %v2636 = vadd.f32 %v2634, %v2582
    %v2637 = vxor.u32 %v2636, 2147483648
    %v2638 = vmul.f32 %v2637, 1.442695
    %v2639 = vpow.pop %v2638
    %v2640 = vadd.f32 %v2639, 1.0
    %v2641 = vrcp.pop %v2640
    %v2642 = vmul.f32 1.0, %v2641
    %v2643 = vmul.f32 %v2632, %v2621
    %v2644 = vrot.slane %v2366, 2
    %v2646 = vadd.f32 %v2644, %v2643
    %v2647 = vtanh.pop %v2646
    %v2648 = vsub.f32 1.0, %v2642
    %v2649 = vmul.f32 %v2648, %v2647
    %v2650 = vmul.f32 %v2642, %v2363
    %v2651 = vadd.f32 %v2649, %v2650
    %2652 = vst [vmem:[#allocation3 + $0x7] sm:$0x1] %v2651
    %v2653 = vld [vmem:[#allocation3] sm:$0xff]
    %2654 = vst [vmem:[#allocation13] sm:$0xff] %v2653
    %v2655 = vld [vmem:[#allocation3] sm:$0xff]
    %v2656 = vpack.c.bf16 %v2655, %v2655
    %v2657 = vld [vmem:[#allocation10] sm:$0xff]
    %v2658 = vld [vmem:[#allocation10 + $0x8] sm:$0xff]
    %v2659 = vld [vmem:[#allocation10 + $0x10] sm:$0xff]
    %v2660 = vld [vmem:[#allocation10 + $0x18] sm:$0xff]
    %v2661 = vld [vmem:[#allocation10 + $0x20] sm:$0xff]
    %v2662 = vld [vmem:[#allocation10 + $0x28] sm:$0xff]
    %v2663 = vld [vmem:[#allocation10 + $0x30] sm:$0xff]
    %v2664 = vld [vmem:[#allocation10 + $0x38] sm:$0xff]
    %v2665 = vld [vmem:[#allocation10 + $0x40] sm:$0xff]
    %v2666 = vld [vmem:[#allocation10 + $0x48] sm:$0xff]
    %v2667 = vld [vmem:[#allocation10 + $0x50] sm:$0xff]
    %v2668 = vld [vmem:[#allocation10 + $0x58] sm:$0xff]
    %v2669 = vld [vmem:[#allocation10 + $0x60] sm:$0xff]
    %v2670 = vld [vmem:[#allocation10 + $0x68] sm:$0xff]
    %v2671 = vld [vmem:[#allocation10 + $0x70] sm:$0xff]
    %v2672 = vld [vmem:[#allocation10 + $0x78] sm:$0xff]
    %v2673 = vld [vmem:[%s6] sm:$0x3]
    %v2675 = vlaneseq
    %v2676 = vshrl.u32 %v2675, 7
    %v2677 = vsub.s32 0, %v2676
    %v2678 = vrot.slane %v2673, %v2677
    %v2679 = vlaneseq
    %v2680 = vshrl.u32 %v2679, 7
    %v2681 = vsub.s32 1, %v2680
    %v2682 = vrot.slane %v2673, %v2681
    %v2701 = vunpack.c.l.b16 %v2657
    %v2702 = vunpack.c.h.b16 %v2657
    %v2703 = vunpack.c.l.b16 %v2658
    %v2704 = vunpack.c.h.b16 %v2658
    %v2705 = vunpack.c.l.b16 %v2659
    %v2706 = vunpack.c.h.b16 %v2659
    %v2707 = vunpack.c.l.b16 %v2660
    %v2708 = vunpack.c.h.b16 %v2660
    %v2709 = vunpack.c.l.b16 %v2661
    %v2710 = vunpack.c.h.b16 %v2661
    %v2711 = vunpack.c.l.b16 %v2662
    %v2712 = vunpack.c.h.b16 %v2662
    %v2713 = vunpack.c.l.b16 %v2663
    %v2714 = vunpack.c.h.b16 %v2663
    %v2715 = vunpack.c.l.b16 %v2664
    %v2716 = vunpack.c.h.b16 %v2664
    %v2717 = vunpack.c.l.b16 %v2665
    %v2718 = vunpack.c.h.b16 %v2665
    %v2719 = vunpack.c.l.b16 %v2666
    %v2720 = vunpack.c.h.b16 %v2666
    %v2721 = vunpack.c.l.b16 %v2667
    %v2722 = vunpack.c.h.b16 %v2667
    %v2723 = vunpack.c.l.b16 %v2668
    %v2724 = vunpack.c.h.b16 %v2668
    %v2725 = vunpack.c.l.b16 %v2669
    %v2726 = vunpack.c.h.b16 %v2669
    %v2727 = vunpack.c.l.b16 %v2670
    %v2728 = vunpack.c.h.b16 %v2670
    %v2729 = vunpack.c.l.b16 %v2671
    %v2730 = vunpack.c.h.b16 %v2671
    %v2731 = vunpack.c.l.b16 %v2672
    %v2732 = vunpack.c.h.b16 %v2672
    %v2733 = vpack.c.b16 %v2703, %v2701
    %v2734 = vpack.c.b16 %v2704, %v2702
    %v2735 = vpack.c.b16 %v2707, %v2705
    %v2736 = vpack.c.b16 %v2708, %v2706
    %v2737 = vpack.c.b16 %v2711, %v2709
    %v2738 = vpack.c.b16 %v2712, %v2710
    %v2739 = vpack.c.b16 %v2715, %v2713
    %v2740 = vpack.c.b16 %v2716, %v2714
    %v2741 = vpack.c.b16 %v2719, %v2717
    %v2742 = vpack.c.b16 %v2720, %v2718
    %v2743 = vpack.c.b16 %v2723, %v2721
    %v2744 = vpack.c.b16 %v2724, %v2722
    %v2745 = vpack.c.b16 %v2727, %v2725
    %v2746 = vpack.c.b16 %v2728, %v2726
    %v2747 = vpack.c.b16 %v2731, %v2729
    %v2748 = vpack.c.b16 %v2732, %v2730
    %2765 = vmatprep.subr.bf16.mxu0 %v2734
    %2766 = vmatpush1.bf16.msra.mxu0 %v2733
    %2767 = vmatprep.subr.bf16.mxu0 %v2736
    %2768 = vmatpush1.bf16.msra.mxu0 %v2735
    %2769 = vmatprep.subr.bf16.mxu0 %v2738
    %2770 = vmatpush1.bf16.msra.mxu0 %v2737
    %2771 = vmatprep.subr.bf16.mxu0 %v2740
    %2772 = vmatpush1.bf16.msra.mxu0 %v2739
    %2773 = vmatprep.subr.bf16.mxu0 %v2742
    %2774 = vmatpush1.bf16.msra.mxu0 %v2741
    %2775 = vmatprep.subr.bf16.mxu0 %v2744
    %2776 = vmatpush1.bf16.msra.mxu0 %v2743
    %2777 = vmatprep.subr.bf16.mxu0 %v2746
    %2778 = vmatpush1.bf16.msra.mxu0 %v2745
    %2779 = vmatprep.subr.bf16.mxu0 %v2748
    %2780 = vmatpush1.bf16.msra.mxu0 %v2747
    %2781 = vmatprep.subr.bf16.mxu0 0
    %2782 = vmatpush1.bf16.msra.mxu0 0
    %2783 = vmatprep.subr.bf16.mxu0 0
    %2784 = vmatpush1.bf16.msra.mxu0 0
    %2785 = vmatprep.subr.bf16.mxu0 0
    %2786 = vmatpush1.bf16.msra.mxu0 0
    %2787 = vmatprep.subr.bf16.mxu0 0
    %2788 = vmatpush1.bf16.msra.mxu0 0
    %2789 = vmatprep.subr.bf16.mxu0 0
    %2790 = vmatpush1.bf16.msra.mxu0 0
    %2791 = vmatprep.subr.bf16.mxu0 0
    %2792 = vmatpush1.bf16.msra.mxu0 0
    %2793 = vmatprep.subr.bf16.mxu0 0
    %2794 = vmatpush1.bf16.msra.mxu0 0
    %2795 = vmatprep.subr.bf16.mxu0 0
    %2796 = vmatpush1.bf16.msra.mxu0 0
    %2797 = vmatprep.mubr.bf16.mxu0 0
    %2798 = vmatmul.mubr.bf16.gmra.mrb[0].mxu0 %v2656
    %v2799 = vpop.f32.mrb[0].mxu0
    %v2800 = vadd.f32 %v2678, %v2799
    %v2801 = vpop.f32.mrb[0].mxu0
    %v2802 = vadd.f32 %v2682, %v2801
    %v2803 = vpop.f32.mrb[0].mxu0
    %v2804 = vpop.f32.mrb[0].mxu0
    %2805 = vdwg.mxu0
    %v2806 = vmax.f32 %v2800, %v2802
    %2807 = vmax.xlane.f32.xlu0 %v2806
    %v2808 = vpop.xlane.xlu0 %2807
    %v2809 = vsub.f32 %v2800, %v2808
    %v2810 = vsub.f32 %v2802, %v2808
    %v2811 = vmul.f32 %v2809, 1.442695
    %v2812 = vpow.pop %v2811
    %v2813 = vmul.f32 %v2810, 1.442695
    %v2814 = vpow.pop %v2813
    %v2815 = vadd.f32 %v2812, %v2814
    %2816 = vadd.xlane.f32.xlu0 %v2815
    %v2817 = vpop.xlane.xlu0 %2816
    %v2818 = vlog2.pop %v2817
    %v2819 = vmul.f32 %v2818, 0.6931472
    %v2820 = vsub.f32 %v2809, %v2819
    %v2821 = vsub.f32 %v2810, %v2819
    %2822 = vst [vmem:[#allocation12] sm:$0xff] %v2820
    %2823 = vst [vmem:[#allocation12 + $0x8] sm:$0xff] %v2821
    // Predicated region
    $region50: #{tpu_custom_call.1} parent=1 // pred_check
      _
    $region51: #{tpu_custom_call.1} parent=1 // pred_check_branch
      %2825 = sbr.rel (0) target = $region53
    $region52: #{tpu_custom_call.1} parent=1 // pred_region
      %s2827 = ssub.s32 256, 256
      %2828 = vsyncadd [#allocation6], %s2827
      %s2830 = sshll.u32 [#allocation12], 4
      %s2831 = int_to_ptr.vmem [resolvable:$true] %s2830
      %2833 = dma.vmem_to_hbm [thread:$0]  %s2831, 256, %s8, [#allocation6]
    $region53: #{tpu_custom_call.1} parent=1 // pred_fallthru
      _
    // Predicated region
    $region54: #{tpu_custom_call.1} parent=1 // pred_check
      _
    $region55: #{tpu_custom_call.1} parent=1 // pred_check_branch
      %2835 = sbr.rel (0) target = $region57
    $region56: #{tpu_custom_call.1} parent=1 // pred_region
      %s2837 = ssub.s32 128, 128
      %2838 = vsyncadd [#allocation14], %s2837
      %s2840 = sshll.u32 [#allocation13], 4
      %s2841 = int_to_ptr.vmem [resolvable:$true] %s2840
      %2843 = dma.vmem_to_hbm [thread:$0]  %s2841, 128, %s9, [#allocation14]
    $region57: #{tpu_custom_call.1} parent=1 // pred_fallthru
      _
    // Predicated region
    $region58: #{tpu_custom_call.1} parent=1 // pred_check
      _
    $region59: #{tpu_custom_call.1} parent=1 // pred_check_branch
      %2845 = sbr.rel (0) target = $region61
    $region60: #{tpu_custom_call.1} parent=1 // pred_region
      %2846 = dma.done [#allocation6], 256
    $region61: #{tpu_custom_call.1} parent=1 // pred_fallthru
      _
    // Predicated region
    $region62: #{tpu_custom_call.1} parent=1 // pred_check
      _
    $region63: #{tpu_custom_call.1} parent=1 // pred_check_branch
      %2848 = sbr.rel (0) target = $region65
    $region64: #{tpu_custom_call.1} parent=1 // pred_region
      %2849 = dma.done [#allocation14], 128
    $region65: #{tpu_custom_call.1} parent=1 // pred_fallthru
      _
    %2850 = vsyncpa [#allocation5], 1
    %2851 = vsyncpa [#allocation8], 1
    %2852 = vsyncpa [#allocation11], 1
    %2853 = vsyncpa [#allocation6], 1
    %2854 = vsyncpa [#allocation14], 1

</llo_original>
